<compile_context>
chip_gen: v7x
topology: tpu7x:2x2x1
jax: 0.10.0
libtpu: 0.0.40
codegen_flags: <defaults>
</compile_context>

<pallas_src>
import functools

import jax
import jax.numpy as jnp
from jax.experimental import pallas as pl
from jax.experimental.pallas import tpu as pltpu


# ----------------------------------------------------------------------------
# activations (MobileNetV3 semantics). `nolinear` in the PyTorch module is an
# arbitrary nn.Module; ReLU and hswish (the MobileNetV3 choices) are supported.
# ----------------------------------------------------------------------------
def _act(x, name):
    if name == "linear":
        return x
    if name == "relu":
        return jnp.maximum(x, 0.0)
    if name == "hswish":
        return x * jnp.clip(x + 3.0, 0.0, 6.0) * (1.0 / 6.0)
    raise ValueError(name)


# ----------------------------------------------------------------------------
# fused Block kernel (one image per grid step)
# ----------------------------------------------------------------------------
def _block_kernel(*refs, stride, act, has_se, shortcut, Ho, Wo, pad):
    it = iter(refs)
    x_ref = next(it)
    w1_ref, s1_ref, b1_ref = next(it), next(it), next(it)
    wdw_ref, s2_ref, b2_ref = next(it), next(it), next(it)
    w3_ref, s3_ref, b3_ref = next(it), next(it), next(it)
    if has_se:
        wq_ref, sq_ref, bq_ref = next(it), next(it), next(it)
        we_ref, sg_ref, bg_ref = next(it), next(it), next(it)
    if shortcut == "conv":
        wsc_ref, ssc_ref, bsc_ref = next(it), next(it), next(it)
    o_ref = next(it)
    xpad_ref = next(it)                                   # (Hp, Wp, E) f32 scratch

    _, H, W, Cin = x_ref.shape
    k = wdw_ref.shape[0]
    E = w1_ref.shape[1]
    Cout = w3_ref.shape[1]

    x = x_ref[0]                                          # (H, W, Cin) f32

    # 1) expand 1x1 conv + BN + act  (MXU: bf16 inputs, f32 accumulate)
    h = jnp.dot(x.reshape(H * W, Cin).astype(jnp.bfloat16), w1_ref[...],
                preferred_element_type=jnp.float32)
    h = _act(h * s1_ref[...] + b1_ref[...], act)          # (H*W, E) f32

    # 2) stage the expanded activation in a zero-padded VMEM scratch
    xpad_ref[...] = jnp.zeros_like(xpad_ref)
    xpad_ref[pl.ds(pad, H), pl.ds(pad, W), :] = h.reshape(H, W, E)

    # 3) depthwise kxk conv with the stride folded into the taps + BN + act
    wdw = wdw_ref[...]                                    # (k, k, E) f32
    acc = jnp.zeros((Ho, Wo, E), jnp.float32)
    for ki in range(k):
        for kj in range(k):
            if stride == 1:
                tap = xpad_ref[pl.ds(ki, Ho), pl.ds(kj, Wo), :]
            else:
                tap = xpad_ref[pl.ds(ki, Ho, stride), pl.ds(kj, Wo, stride), :]
            acc = acc + tap * wdw[ki, kj]
    dw = _act(acc * s2_ref[...] + b2_ref[...], act)       # (Ho, Wo, E) f32

    # 4) project 1x1 conv + BN (linear)
    out = jnp.dot(dw.reshape(Ho * Wo, E).astype(jnp.bfloat16), w3_ref[...],
                  preferred_element_type=jnp.float32)
    out = out * s3_ref[...] + b3_ref[...]                 # (Ho*Wo, Cout) f32

    # 5) fused Squeeze-Excite gating
    if has_se:
        m = jnp.sum(out, axis=0, keepdims=True) * (1.0 / (Ho * Wo))   # (1, Cout)
        g = jnp.dot(m, wq_ref[...], preferred_element_type=jnp.float32)
        g = jnp.maximum(g * sq_ref[...] + bq_ref[...], 0.0)
        g = jnp.dot(g, we_ref[...], preferred_element_type=jnp.float32)
        g = g * sg_ref[...] + bg_ref[...]
        g = jnp.clip(g + 3.0, 0.0, 6.0) * (1.0 / 6.0)     # hsigmoid
        out = out * g

    # 6) fused residual shortcut (stride == 1 only)
    if shortcut == "identity":
        out = out + x.reshape(H * W, Cin)
    elif shortcut == "conv":
        sc = jnp.dot(x.reshape(H * W, Cin).astype(jnp.bfloat16), wsc_ref[...],
                     preferred_element_type=jnp.float32)
        out = out + (sc * ssc_ref[...] + bsc_ref[...])

    o_ref[0] = out.reshape(Ho, Wo, Cout).astype(o_ref.dtype)


# ----------------------------------------------------------------------------
# wrapper: builds specs, sizes VMEM, launches the fused kernel
# ----------------------------------------------------------------------------
def block_forward_nhwc(x, p, cfg):
    k, cin, E, cout, act, has_se, stride = cfg
    N, H, W, _ = x.shape
    pad = k // 2
    Hp, Wp = H + 2 * pad, W + 2 * pad
    Ho = (H + 2 * pad - k) // stride + 1
    Wo = (W + 2 * pad - k) // stride + 1
    shortcut = None if stride != 1 else ("identity" if cin == cout else "conv")

    def full(*shape):
        nd = len(shape)
        return pl.BlockSpec(shape, lambda n: (0,) * nd)

    inputs = [x,
              p["w1"], p["s1"].reshape(1, E), p["b1"].reshape(1, E),
              p["wdw"], p["s2"].reshape(1, E), p["b2"].reshape(1, E),
              p["w3"], p["s3"].reshape(1, cout), p["b3"].reshape(1, cout)]
    in_specs = [pl.BlockSpec((1, H, W, cin), lambda n: (n, 0, 0, 0)),
                full(cin, E), full(1, E), full(1, E),
                full(k, k, E), full(1, E), full(1, E),
                full(E, cout), full(1, cout), full(1, cout)]
    if has_se:
        se = p["se"]
        cr = se["w1"].shape[1]
        inputs += [se["w1"], se["s1"].reshape(1, cr), se["b1"].reshape(1, cr),
                   se["w2"], se["s2"].reshape(1, cout), se["b2"].reshape(1, cout)]
        in_specs += [full(cout, cr), full(1, cr), full(1, cr),
                     full(cr, cout), full(1, cout), full(1, cout)]
    if shortcut == "conv":
        inputs += [p["wsc"], p["ssc"].reshape(1, cout), p["bsc"].reshape(1, cout)]
        in_specs += [full(cin, cout), full(1, cout), full(1, cout)]

    # VMEM budget from the actual block shapes (double-buffered) + scratch,
    # capped so it is valid on every TPU generation (incl. v7x's 64 MiB).
    blk_bytes = (H * W * cin + Ho * Wo * cout) * 4
    wt_bytes = sum(int(a.size) * jnp.dtype(a.dtype).itemsize for a in inputs[1:])
    scratch_bytes = Hp * Wp * E * 4
    vmem_limit = int(min(32 * 2 ** 20,
                         max(16 * 2 ** 20,
                             2 * (blk_bytes + wt_bytes) + scratch_bytes + (2 << 20))))

    kern = functools.partial(_block_kernel, stride=stride, act=act,
                             has_se=bool(has_se), shortcut=shortcut,
                             Ho=Ho, Wo=Wo, pad=pad)
    return pl.pallas_call(
        kern,
        out_shape=jax.ShapeDtypeStruct((N, Ho, Wo, cout), jnp.float32),
        grid=(N,),
        in_specs=in_specs,
        out_specs=pl.BlockSpec((1, Ho, Wo, cout), lambda n: (n, 0, 0, 0)),
        scratch_shapes=[pltpu.VMEM((Hp, Wp, E), jnp.float32)],
        compiler_params=pltpu.CompilerParams(
            dimension_semantics=("parallel",),      # batch -> 2 TCs on v7x
            vmem_limit_bytes=vmem_limit),
    )(*inputs)


@functools.partial(jax.jit, static_argnums=(2,))
def block_apply(x_nchw, params, cfg):
    """PyTorch-compatible interface: NCHW in, NCHW out."""
    x = jnp.transpose(x_nchw, (0, 2, 3, 1)).astype(jnp.float32)
    y = block_forward_nhwc(x, params, cfg)
    return jnp.transpose(y, (0, 3, 1, 2))


# ----------------------------------------------------------------------------
# pure-JAX reference with matching numerics (bf16 matmul inputs, f32 elsewhere)
# ----------------------------------------------------------------------------
@functools.partial(jax.jit, static_argnums=(2,))
def block_reference(x_nchw, p, cfg):
    k, cin, E, cout, act, has_se, stride = cfg
    x = jnp.transpose(x_nchw, (0, 2, 3, 1)).astype(jnp.float32)
    N, H, W, _ = x.shape
    pad = k // 2
    Ho = (H + 2 * pad - k) // stride + 1
    Wo = (W + 2 * pad - k) // stride + 1

    h = jnp.dot(x.reshape(N * H * W, cin).astype(jnp.bfloat16), p["w1"],
                preferred_element_type=jnp.float32)
    h = _act(h * p["s1"] + p["b1"], act).reshape(N, H, W, E)

    hp = jnp.pad(h, ((0, 0), (pad, pad), (pad, pad), (0, 0)))
    acc = jnp.zeros((N, Ho, Wo, E), jnp.float32)
    for ki in range(k):
        for kj in range(k):
            tap = jax.lax.slice(hp, (0, ki, kj, 0),
                                (N, ki + stride * (Ho - 1) + 1,
                                 kj + stride * (Wo - 1) + 1, E),
                                (1, stride, stride, 1))
            acc = acc + tap * p["wdw"][ki, kj]
    dw = _act(acc * p["s2"] + p["b2"], act)

    out = jnp.dot(dw.reshape(N * Ho * Wo, E).astype(jnp.bfloat16), p["w3"],
                  preferred_element_type=jnp.float32)
    out = (out * p["s3"] + p["b3"]).reshape(N, Ho, Wo, cout)

    if has_se:
        se = p["se"]
        m = jnp.mean(out, axis=(1, 2))
        g = jnp.maximum(jnp.dot(m, se["w1"], preferred_element_type=jnp.float32)
                        * se["s1"] + se["b1"], 0.0)
        g = (jnp.dot(g, se["w2"], preferred_element_type=jnp.float32)
             * se["s2"] + se["b2"])
        g = jnp.clip(g + 3.0, 0.0, 6.0) * (1.0 / 6.0)
        out = out * g[:, None, None, :]

    if stride == 1:
        if cin == cout:
            sc = x
        else:
            sc = (jnp.dot(x.reshape(N * H * W, cin).astype(jnp.bfloat16), p["wsc"],
                          preferred_element_type=jnp.float32)
                  * p["ssc"] + p["bsc"]).reshape(N, H, W, cout)
        out = out + sc
    return jnp.transpose(out, (0, 3, 1, 2))


# ----------------------------------------------------------------------------
# deterministic synthetic parameters (BN folded to inference affine)
# ----------------------------------------------------------------------------
class _KeyGen:
    def __init__(self, key):
        self.key = key

    def __call__(self):
        self.key, sub = jax.random.split(self.key)
        return sub


def _w(kg, shape):
    fan_in = 1
    for d in shape[:-1]:
        fan_in *= d
    return ((2.0 / fan_in) ** 0.5) * jax.random.normal(kg(), shape, jnp.float32)


def _bn(kg, c):
    scale = 1.0 + 0.05 * jax.random.normal(kg(), (c,), jnp.float32)
    bias = 0.05 * jax.random.normal(kg(), (c,), jnp.float32)
    return scale, bias


def init_block_params(key, cfg):
    k, cin, E, cout, act, has_se, stride = cfg
    kg = _KeyGen(key)
    p = {"w1": _w(kg, (cin, E)).astype(jnp.bfloat16)}
    p["s1"], p["b1"] = _bn(kg, E)
    p["wdw"] = _w(kg, (k, k, E))
    p["s2"], p["b2"] = _bn(kg, E)
    p["w3"] = _w(kg, (E, cout)).astype(jnp.bfloat16)
    p["s3"], p["b3"] = _bn(kg, cout)
    if has_se:
        cr = max(cout // 4, 4)
        se = {"w1": _w(kg, (cout, cr)), "w2": _w(kg, (cr, cout))}
        se["s1"], se["b1"] = _bn(kg, cr)
        se["s2"], se["b2"] = _bn(kg, cout)
        p["se"] = se
    if stride == 1 and cin != cout:
        p["wsc"] = _w(kg, (cin, cout)).astype(jnp.bfloat16)
        p["ssc"], p["bsc"] = _bn(kg, cout)
    return p


# ----------------------------------------------------------------------------
if __name__ == "__main__":
    #        (kernel, in, expand, out, act, has_se, stride)
    configs = [
        (3, 16, 16, 16, "relu", True, 2),      # stride-2 + SE, no shortcut
        (3, 16, 72, 24, "relu", False, 2),     # stride-2, no SE
        (5, 40, 240, 40, "hswish", True, 1),   # stride-1, identity shortcut + SE
        (5, 40, 120, 48, "hswish", True, 1),   # stride-1, conv shortcut + SE
    ]
    N, H, W = 2, 16, 16
    key = jax.random.PRNGKey(0)

    for i, cfg in enumerate(configs):
        key, kp, kx = jax.random.split(key, 3)
        params = init_block_params(kp, cfg)
        x = jax.random.normal(kx, (N, cfg[1], H, W), jnp.float32)   # NCHW

        y = jax.block_until_ready(block_apply(x, params, cfg))
        y_ref = jax.block_until_ready(block_reference(x, params, cfg))

        stride, cout = cfg[6], cfg[3]
        assert y.shape == (N, cout, H // stride, W // stride), (i, y.shape)
        err = float(jnp.max(jnp.abs(y - y_ref)) /
                    (jnp.max(jnp.abs(y_ref)) + 1e-6))
        assert err < 2e-2, (i, err)

    print("KERNEL_OK")
</pallas_src>

<mosaic_0001>
module attributes {stable_mosaic.version = 11 : i64} {
  func.func @_block_kernel(%arg0: i32, %arg1: memref<1x16x16x16xf32, #tpu.memory_space<vmem>>, %arg2: memref<16x16xbf16, #tpu.memory_space<vmem>>, %arg3: memref<1x16xf32, #tpu.memory_space<vmem>>, %arg4: memref<1x16xf32, #tpu.memory_space<vmem>>, %arg5: memref<3x3x16xf32, #tpu.memory_space<vmem>>, %arg6: memref<1x16xf32, #tpu.memory_space<vmem>>, %arg7: memref<1x16xf32, #tpu.memory_space<vmem>>, %arg8: memref<16x16xbf16, #tpu.memory_space<vmem>>, %arg9: memref<1x16xf32, #tpu.memory_space<vmem>>, %arg10: memref<1x16xf32, #tpu.memory_space<vmem>>, %arg11: memref<16x4xf32, #tpu.memory_space<vmem>>, %arg12: memref<1x4xf32, #tpu.memory_space<vmem>>, %arg13: memref<1x4xf32, #tpu.memory_space<vmem>>, %arg14: memref<4x16xf32, #tpu.memory_space<vmem>>, %arg15: memref<1x16xf32, #tpu.memory_space<vmem>>, %arg16: memref<1x16xf32, #tpu.memory_space<vmem>>, %arg17: memref<1x8x8x16xf32, #tpu.memory_space<vmem>>, %arg18: memref<18x18x16xf32, #tpu.memory_space<vmem>>) attributes {dimension_semantics = [#tpu.dimension_semantics<parallel>], iteration_bounds = array<i64: 2>, scalar_prefetch = 0 : i64, scratch_operands = 1 : i64, tpu.core_type = #tpu.core_type<tc>, window_params = [{transform_indices = @transform_0, window_bounds = array<i64: 1, 16, 16, 16>}, {pipeline_mode = #tpu.pipeline_mode<synchronous>, transform_indices = @transform_1, window_bounds = array<i64: 16, 16>}, {pipeline_mode = #tpu.pipeline_mode<synchronous>, transform_indices = @transform_2, window_bounds = array<i64: 1, 16>}, {pipeline_mode = #tpu.pipeline_mode<synchronous>, transform_indices = @transform_3, window_bounds = array<i64: 1, 16>}, {pipeline_mode = #tpu.pipeline_mode<synchronous>, transform_indices = @transform_4, window_bounds = array<i64: 3, 3, 16>}, {pipeline_mode = #tpu.pipeline_mode<synchronous>, transform_indices = @transform_5, window_bounds = array<i64: 1, 16>}, {pipeline_mode = #tpu.pipeline_mode<synchronous>, transform_indices = @transform_6, window_bounds = array<i64: 1, 16>}, {pipeline_mode = #tpu.pipeline_mode<synchronous>, transform_indices = @transform_7, window_bounds = array<i64: 16, 16>}, {pipeline_mode = #tpu.pipeline_mode<synchronous>, transform_indices = @transform_8, window_bounds = array<i64: 1, 16>}, {pipeline_mode = #tpu.pipeline_mode<synchronous>, transform_indices = @transform_9, window_bounds = array<i64: 1, 16>}, {pipeline_mode = #tpu.pipeline_mode<synchronous>, transform_indices = @transform_10, window_bounds = array<i64: 16, 4>}, {pipeline_mode = #tpu.pipeline_mode<synchronous>, transform_indices = @transform_11, window_bounds = array<i64: 1, 4>}, {pipeline_mode = #tpu.pipeline_mode<synchronous>, transform_indices = @transform_12, window_bounds = array<i64: 1, 4>}, {pipeline_mode = #tpu.pipeline_mode<synchronous>, transform_indices = @transform_13, window_bounds = array<i64: 4, 16>}, {pipeline_mode = #tpu.pipeline_mode<synchronous>, transform_indices = @transform_14, window_bounds = array<i64: 1, 16>}, {pipeline_mode = #tpu.pipeline_mode<synchronous>, transform_indices = @transform_15, window_bounds = array<i64: 1, 16>}, {transform_indices = @transform_16, window_bounds = array<i64: 1, 8, 8, 16>}]} {
    %c0 = arith.constant 0 : index
    %c0_0 = arith.constant 0 : index
    %c0_1 = arith.constant 0 : index
    %c0_2 = arith.constant 0 : index
    %0 = vector.load %arg1[%c0, %c0_0, %c0_1, %c0_2] : memref<1x16x16x16xf32, #tpu.memory_space<vmem>>, vector<1x16x16x16xf32>
    %1 = vector.shape_cast %0 : vector<1x16x16x16xf32> to vector<16x16x16xf32>
    %2 = vector.shape_cast %1 : vector<16x16x16xf32> to vector<256x16xf32>
    %3 = arith.truncf %2 : vector<256x16xf32> to vector<256x16xbf16>
    %c0_3 = arith.constant 0 : index
    %c0_4 = arith.constant 0 : index
    %4 = vector.load %arg2[%c0_3, %c0_4] : memref<16x16xbf16, #tpu.memory_space<vmem>>, vector<16x16xbf16>
    %cst = arith.constant dense<0.000000e+00> : vector<256x16xf32>
    %5 = tpu.matmul %3, %4, %cst {dimension_numbers = #tpu.dot_dimension_numbers<[1], [0], [0], [1], [0, 0, 1, 1], [], []>} : vector<256x16xbf16>, vector<16x16xbf16>, vector<256x16xf32> -> vector<256x16xf32>
    %c0_5 = arith.constant 0 : index
    %c0_6 = arith.constant 0 : index
    %6 = vector.load %arg3[%c0_5, %c0_6] : memref<1x16xf32, #tpu.memory_space<vmem>>, vector<1x16xf32>
    %7 = vector.broadcast %6 : vector<1x16xf32> to vector<256x16xf32>
    %8 = arith.mulf %5, %7 : vector<256x16xf32>
    %c0_7 = arith.constant 0 : index
    %c0_8 = arith.constant 0 : index
    %9 = vector.load %arg4[%c0_7, %c0_8] : memref<1x16xf32, #tpu.memory_space<vmem>>, vector<1x16xf32>
    %10 = vector.broadcast %9 : vector<1x16xf32> to vector<256x16xf32>
    %11 = arith.addf %8, %10 : vector<256x16xf32>
    %cst_9 = arith.constant 0.000000e+00 : f32
    %12 = vector.broadcast %cst_9 : f32 to vector<256x16xf32>
    %13 = arith.maximumf %11, %12 : vector<256x16xf32>
    %cst_10 = arith.constant 0.000000e+00 : f32
    %14 = vector.broadcast %cst_10 : f32 to vector<18x18x16xf32>
    %c0_11 = arith.constant 0 : index
    %c0_12 = arith.constant 0 : index
    %c0_13 = arith.constant 0 : index
    %15 = vector.load %arg18[%c0_11, %c0_12, %c0_13] : memref<18x18x16xf32, #tpu.memory_space<vmem>>, vector<18x18x16xf32>
    tpu.vector_store %arg18[%c0_11, %c0_12, %c0_13], %14 {strides = array<i32>} : memref<18x18x16xf32, #tpu.memory_space<vmem>>, vector<18x18x16xf32>,
    %16 = vector.shape_cast %13 : vector<256x16xf32> to vector<16x16x16xf32>
    %c1 = arith.constant 1 : index
    %c1_14 = arith.constant 1 : index
    %c0_15 = arith.constant 0 : index
    %17 = vector.load %arg18[%c1, %c1_14, %c0_15] : memref<18x18x16xf32, #tpu.memory_space<vmem>>, vector<16x16x16xf32>
    tpu.vector_store %arg18[%c1, %c1_14, %c0_15], %16 {strides = array<i32>} : memref<18x18x16xf32, #tpu.memory_space<vmem>>, vector<16x16x16xf32>,
    %c0_16 = arith.constant 0 : index
    %c0_17 = arith.constant 0 : index
    %c0_18 = arith.constant 0 : index
    %18 = vector.load %arg5[%c0_16, %c0_17, %c0_18] : memref<3x3x16xf32, #tpu.memory_space<vmem>>, vector<3x3x16xf32>
    %cst_19 = arith.constant 0.000000e+00 : f32
    %19 = vector.broadcast %cst_19 : f32 to vector<8x8x16xf32>
    %c0_20 = arith.constant 0 : index
    %c0_21 = arith.constant 0 : index
    %c0_22 = arith.constant 0 : index
    %20 = tpu.strided_load %arg18[%c0_20, %c0_21, %c0_22] {strides = array<i32: 2, 2, 1>} : memref<18x18x16xf32, #tpu.memory_space<vmem>>, vector<8x8x16xf32>
    %21 = vector.extract_strided_slice %18 {offsets = [0, 0, 0], sizes = [1, 1, 16], strides = [1, 1, 1]} : vector<3x3x16xf32> to vector<1x1x16xf32>
    %22 = vector.shape_cast %21 : vector<1x1x16xf32> to vector<16xf32>
    %23 = vector.shape_cast %22 : vector<16xf32> to vector<1x1x16xf32>
    %24 = vector.broadcast %23 : vector<1x1x16xf32> to vector<8x8x16xf32>
    %25 = arith.mulf %20, %24 : vector<8x8x16xf32>
    %26 = arith.addf %19, %25 : vector<8x8x16xf32>
    %c0_23 = arith.constant 0 : index
    %c1_24 = arith.constant 1 : index
    %c0_25 = arith.constant 0 : index
    %27 = tpu.strided_load %arg18[%c0_23, %c1_24, %c0_25] {strides = array<i32: 2, 2, 1>} : memref<18x18x16xf32, #tpu.memory_space<vmem>>, vector<8x8x16xf32>
    %28 = vector.extract_strided_slice %18 {offsets = [0, 1, 0], sizes = [1, 1, 16], strides = [1, 1, 1]} : vector<3x3x16xf32> to vector<1x1x16xf32>
    %29 = vector.shape_cast %28 : vector<1x1x16xf32> to vector<16xf32>
    %30 = vector.shape_cast %29 : vector<16xf32> to vector<1x1x16xf32>
    %31 = vector.broadcast %30 : vector<1x1x16xf32> to vector<8x8x16xf32>
    %32 = arith.mulf %27, %31 : vector<8x8x16xf32>
    %33 = arith.addf %26, %32 : vector<8x8x16xf32>
    %c0_26 = arith.constant 0 : index
    %c2 = arith.constant 2 : index
    %c0_27 = arith.constant 0 : index
    %34 = tpu.strided_load %arg18[%c0_26, %c2, %c0_27] {strides = array<i32: 2, 2, 1>} : memref<18x18x16xf32, #tpu.memory_space<vmem>>, vector<8x8x16xf32>
    %35 = vector.extract_strided_slice %18 {offsets = [0, 2, 0], sizes = [1, 1, 16], strides = [1, 1, 1]} : vector<3x3x16xf32> to vector<1x1x16xf32>
    %36 = vector.shape_cast %35 : vector<1x1x16xf32> to vector<16xf32>
    %37 = vector.shape_cast %36 : vector<16xf32> to vector<1x1x16xf32>
    %38 = vector.broadcast %37 : vector<1x1x16xf32> to vector<8x8x16xf32>
    %39 = arith.mulf %34, %38 : vector<8x8x16xf32>
    %40 = arith.addf %33, %39 : vector<8x8x16xf32>
    %c1_28 = arith.constant 1 : index
    %c0_29 = arith.constant 0 : index
    %c0_30 = arith.constant 0 : index
    %41 = tpu.strided_load %arg18[%c1_28, %c0_29, %c0_30] {strides = array<i32: 2, 2, 1>} : memref<18x18x16xf32, #tpu.memory_space<vmem>>, vector<8x8x16xf32>
    %42 = vector.extract_strided_slice %18 {offsets = [1, 0, 0], sizes = [1, 1, 16], strides = [1, 1, 1]} : vector<3x3x16xf32> to vector<1x1x16xf32>
    %43 = vector.shape_cast %42 : vector<1x1x16xf32> to vector<16xf32>
    %44 = vector.shape_cast %43 : vector<16xf32> to vector<1x1x16xf32>
    %45 = vector.broadcast %44 : vector<1x1x16xf32> to vector<8x8x16xf32>
    %46 = arith.mulf %41, %45 : vector<8x8x16xf32>
    %47 = arith.addf %40, %46 : vector<8x8x16xf32>
    %c1_31 = arith.constant 1 : index
    %c1_32 = arith.constant 1 : index
    %c0_33 = arith.constant 0 : index
    %48 = tpu.strided_load %arg18[%c1_31, %c1_32, %c0_33] {strides = array<i32: 2, 2, 1>} : memref<18x18x16xf32, #tpu.memory_space<vmem>>, vector<8x8x16xf32>
    %49 = vector.extract_strided_slice %18 {offsets = [1, 1, 0], sizes = [1, 1, 16], strides = [1, 1, 1]} : vector<3x3x16xf32> to vector<1x1x16xf32>
    %50 = vector.shape_cast %49 : vector<1x1x16xf32> to vector<16xf32>
    %51 = vector.shape_cast %50 : vector<16xf32> to vector<1x1x16xf32>
    %52 = vector.broadcast %51 : vector<1x1x16xf32> to vector<8x8x16xf32>
    %53 = arith.mulf %48, %52 : vector<8x8x16xf32>
    %54 = arith.addf %47, %53 : vector<8x8x16xf32>
    %c1_34 = arith.constant 1 : index
    %c2_35 = arith.constant 2 : index
    %c0_36 = arith.constant 0 : index
    %55 = tpu.strided_load %arg18[%c1_34, %c2_35, %c0_36] {strides = array<i32: 2, 2, 1>} : memref<18x18x16xf32, #tpu.memory_space<vmem>>, vector<8x8x16xf32>
    %56 = vector.extract_strided_slice %18 {offsets = [1, 2, 0], sizes = [1, 1, 16], strides = [1, 1, 1]} : vector<3x3x16xf32> to vector<1x1x16xf32>
    %57 = vector.shape_cast %56 : vector<1x1x16xf32> to vector<16xf32>
    %58 = vector.shape_cast %57 : vector<16xf32> to vector<1x1x16xf32>
    %59 = vector.broadcast %58 : vector<1x1x16xf32> to vector<8x8x16xf32>
    %60 = arith.mulf %55, %59 : vector<8x8x16xf32>
    %61 = arith.addf %54, %60 : vector<8x8x16xf32>
    %c2_37 = arith.constant 2 : index
    %c0_38 = arith.constant 0 : index
    %c0_39 = arith.constant 0 : index
    %62 = tpu.strided_load %arg18[%c2_37, %c0_38, %c0_39] {strides = array<i32: 2, 2, 1>} : memref<18x18x16xf32, #tpu.memory_space<vmem>>, vector<8x8x16xf32>
    %63 = vector.extract_strided_slice %18 {offsets = [2, 0, 0], sizes = [1, 1, 16], strides = [1, 1, 1]} : vector<3x3x16xf32> to vector<1x1x16xf32>
    %64 = vector.shape_cast %63 : vector<1x1x16xf32> to vector<16xf32>
    %65 = vector.shape_cast %64 : vector<16xf32> to vector<1x1x16xf32>
    %66 = vector.broadcast %65 : vector<1x1x16xf32> to vector<8x8x16xf32>
    %67 = arith.mulf %62, %66 : vector<8x8x16xf32>
    %68 = arith.addf %61, %67 : vector<8x8x16xf32>
    %c2_40 = arith.constant 2 : index
    %c1_41 = arith.constant 1 : index
    %c0_42 = arith.constant 0 : index
    %69 = tpu.strided_load %arg18[%c2_40, %c1_41, %c0_42] {strides = array<i32: 2, 2, 1>} : memref<18x18x16xf32, #tpu.memory_space<vmem>>, vector<8x8x16xf32>
    %70 = vector.extract_strided_slice %18 {offsets = [2, 1, 0], sizes = [1, 1, 16], strides = [1, 1, 1]} : vector<3x3x16xf32> to vector<1x1x16xf32>
    %71 = vector.shape_cast %70 : vector<1x1x16xf32> to vector<16xf32>
    %72 = vector.shape_cast %71 : vector<16xf32> to vector<1x1x16xf32>
    %73 = vector.broadcast %72 : vector<1x1x16xf32> to vector<8x8x16xf32>
    %74 = arith.mulf %69, %73 : vector<8x8x16xf32>
    %75 = arith.addf %68, %74 : vector<8x8x16xf32>
    %c2_43 = arith.constant 2 : index
    %c2_44 = arith.constant 2 : index
    %c0_45 = arith.constant 0 : index
    %76 = tpu.strided_load %arg18[%c2_43, %c2_44, %c0_45] {strides = array<i32: 2, 2, 1>} : memref<18x18x16xf32, #tpu.memory_space<vmem>>, vector<8x8x16xf32>
    %77 = vector.extract_strided_slice %18 {offsets = [2, 2, 0], sizes = [1, 1, 16], strides = [1, 1, 1]} : vector<3x3x16xf32> to vector<1x1x16xf32>
    %78 = vector.shape_cast %77 : vector<1x1x16xf32> to vector<16xf32>
    %79 = vector.shape_cast %78 : vector<16xf32> to vector<1x1x16xf32>
    %80 = vector.broadcast %79 : vector<1x1x16xf32> to vector<8x8x16xf32>
    %81 = arith.mulf %76, %80 : vector<8x8x16xf32>
    %82 = arith.addf %75, %81 : vector<8x8x16xf32>
    %c0_46 = arith.constant 0 : index
    %c0_47 = arith.constant 0 : index
    %83 = vector.load %arg6[%c0_46, %c0_47] : memref<1x16xf32, #tpu.memory_space<vmem>>, vector<1x16xf32>
    %84 = vector.shape_cast %83 : vector<1x16xf32> to vector<1x1x16xf32>
    %85 = vector.broadcast %84 : vector<1x1x16xf32> to vector<8x8x16xf32>
    %86 = arith.mulf %82, %85 : vector<8x8x16xf32>
    %c0_48 = arith.constant 0 : index
    %c0_49 = arith.constant 0 : index
    %87 = vector.load %arg7[%c0_48, %c0_49] : memref<1x16xf32, #tpu.memory_space<vmem>>, vector<1x16xf32>
    %88 = vector.shape_cast %87 : vector<1x16xf32> to vector<1x1x16xf32>
    %89 = vector.broadcast %88 : vector<1x1x16xf32> to vector<8x8x16xf32>
    %90 = arith.addf %86, %89 : vector<8x8x16xf32>
    %cst_50 = arith.constant 0.000000e+00 : f32
    %91 = vector.broadcast %cst_50 : f32 to vector<8x8x16xf32>
    %92 = arith.maximumf %90, %91 : vector<8x8x16xf32>
    %93 = vector.shape_cast %92 : vector<8x8x16xf32> to vector<64x16xf32>
    %94 = arith.truncf %93 : vector<64x16xf32> to vector<64x16xbf16>
    %c0_51 = arith.constant 0 : index
    %c0_52 = arith.constant 0 : index
    %95 = vector.load %arg8[%c0_51, %c0_52] : memref<16x16xbf16, #tpu.memory_space<vmem>>, vector<16x16xbf16>
    %cst_53 = arith.constant dense<0.000000e+00> : vector<64x16xf32>
    %96 = tpu.matmul %94, %95, %cst_53 {dimension_numbers = #tpu.dot_dimension_numbers<[1], [0], [0], [1], [0, 0, 1, 1], [], []>} : vector<64x16xbf16>, vector<16x16xbf16>, vector<64x16xf32> -> vector<64x16xf32>
    %c0_54 = arith.constant 0 : index
    %c0_55 = arith.constant 0 : index
    %97 = vector.load %arg9[%c0_54, %c0_55] : memref<1x16xf32, #tpu.memory_space<vmem>>, vector<1x16xf32>
    %98 = vector.broadcast %97 : vector<1x16xf32> to vector<64x16xf32>
    %99 = arith.mulf %96, %98 : vector<64x16xf32>
    %c0_56 = arith.constant 0 : index
    %c0_57 = arith.constant 0 : index
    %100 = vector.load %arg10[%c0_56, %c0_57] : memref<1x16xf32, #tpu.memory_space<vmem>>, vector<1x16xf32>
    %101 = vector.broadcast %100 : vector<1x16xf32> to vector<64x16xf32>
    %102 = arith.addf %99, %101 : vector<64x16xf32>
    %cst_58 = arith.constant dense<0.000000e+00> : vector<16xf32>
    %103 = vector.multi_reduction <add>, %102, %cst_58 [0] : vector<64x16xf32> to vector<16xf32>
    %104 = vector.shape_cast %103 : vector<16xf32> to vector<1x16xf32>
    %cst_59 = arith.constant 1.562500e-02 : f32
    %105 = vector.broadcast %cst_59 : f32 to vector<1x16xf32>
    %106 = arith.mulf %104, %105 : vector<1x16xf32>
    %c0_60 = arith.constant 0 : index
    %c0_61 = arith.constant 0 : index
    %107 = vector.load %arg11[%c0_60, %c0_61] : memref<16x4xf32, #tpu.memory_space<vmem>>, vector<16x4xf32>
    %cst_62 = arith.constant dense<0.000000e+00> : vector<1x4xf32>
    %108 = tpu.matmul %106, %107, %cst_62 {dimension_numbers = #tpu.dot_dimension_numbers<[1], [0], [0], [1], [0, 0, 1, 1], [], []>} : vector<1x16xf32>, vector<16x4xf32>, vector<1x4xf32> -> vector<1x4xf32>
    %c0_63 = arith.constant 0 : index
    %c0_64 = arith.constant 0 : index
    %109 = vector.load %arg12[%c0_63, %c0_64] : memref<1x4xf32, #tpu.memory_space<vmem>>, vector<1x4xf32>
    %110 = arith.mulf %108, %109 : vector<1x4xf32>
    %c0_65 = arith.constant 0 : index
    %c0_66 = arith.constant 0 : index
    %111 = vector.load %arg13[%c0_65, %c0_66] : memref<1x4xf32, #tpu.memory_space<vmem>>, vector<1x4xf32>
    %112 = arith.addf %110, %111 : vector<1x4xf32>
    %cst_67 = arith.constant 0.000000e+00 : f32
    %113 = vector.broadcast %cst_67 : f32 to vector<1x4xf32>
    %114 = arith.maximumf %112, %113 : vector<1x4xf32>
    %c0_68 = arith.constant 0 : index
    %c0_69 = arith.constant 0 : index
    %115 = vector.load %arg14[%c0_68, %c0_69] : memref<4x16xf32, #tpu.memory_space<vmem>>, vector<4x16xf32>
    %cst_70 = arith.constant dense<0.000000e+00> : vector<1x16xf32>
    %116 = tpu.matmul %114, %115, %cst_70 {dimension_numbers = #tpu.dot_dimension_numbers<[1], [0], [0], [1], [0, 0, 1, 1], [], []>} : vector<1x4xf32>, vector<4x16xf32>, vector<1x16xf32> -> vector<1x16xf32>
    %c0_71 = arith.constant 0 : index
    %c0_72 = arith.constant 0 : index
    %117 = vector.load %arg15[%c0_71, %c0_72] : memref<1x16xf32, #tpu.memory_space<vmem>>, vector<1x16xf32>
    %118 = arith.mulf %116, %117 : vector<1x16xf32>
    %c0_73 = arith.constant 0 : index
    %c0_74 = arith.constant 0 : index
    %119 = vector.load %arg16[%c0_73, %c0_74] : memref<1x16xf32, #tpu.memory_space<vmem>>, vector<1x16xf32>
    %120 = arith.addf %118, %119 : vector<1x16xf32>
    %cst_75 = arith.constant 3.000000e+00 : f32
    %121 = vector.broadcast %cst_75 : f32 to vector<1x16xf32>
    %122 = arith.addf %120, %121 : vector<1x16xf32>
    %cst_76 = arith.constant 0.000000e+00 : f32
    %cst_77 = arith.constant 6.000000e+00 : f32
    %123 = vector.broadcast %cst_76 : f32 to vector<1x16xf32>
    %124 = arith.maximumf %123, %122 : vector<1x16xf32>
    %125 = vector.broadcast %cst_77 : f32 to vector<1x16xf32>
    %126 = arith.minimumf %125, %124 : vector<1x16xf32>
    %cst_78 = arith.constant 0.166666672 : f32
    %127 = vector.broadcast %cst_78 : f32 to vector<1x16xf32>
    %128 = arith.mulf %126, %127 : vector<1x16xf32>
    %129 = vector.broadcast %128 : vector<1x16xf32> to vector<64x16xf32>
    %130 = arith.mulf %102, %129 : vector<64x16xf32>
    %131 = vector.shape_cast %130 : vector<64x16xf32> to vector<8x8x16xf32>
    %c0_79 = arith.constant 0 : index
    %c0_80 = arith.constant 0 : index
    %c0_81 = arith.constant 0 : index
    %c0_82 = arith.constant 0 : index
    %132 = vector.load %arg17[%c0_79, %c0_80, %c0_81, %c0_82] : memref<1x8x8x16xf32, #tpu.memory_space<vmem>>, vector<1x8x8x16xf32>
    %133 = vector.shape_cast %132 : vector<1x8x8x16xf32> to vector<8x8x16xf32>
    %134 = vector.shape_cast %131 : vector<8x8x16xf32> to vector<1x8x8x16xf32>
    tpu.vector_store %arg17[%c0_79, %c0_80, %c0_81, %c0_82], %134 {strides = array<i32>} : memref<1x8x8x16xf32, #tpu.memory_space<vmem>>, vector<1x8x8x16xf32>,
    return
  }
  func.func @transform_0(%arg0: i32) -> (i32, i32, i32, i32) {
    %c0_i32 = arith.constant 0 : i32
    %c0_i32_0 = arith.constant 0 : i32
    %c0_i32_1 = arith.constant 0 : i32
    %c0_i32_2 = arith.constant 0 : i32
    return %arg0, %c0_i32, %c0_i32_0, %c0_i32_1 : i32, i32, i32, i32
  }
  func.func @transform_1(%arg0: i32) -> (i32, i32) {
    %c0_i32 = arith.constant 0 : i32
    %c0_i32_0 = arith.constant 0 : i32
    %c0_i32_1 = arith.constant 0 : i32
    return %c0_i32, %c0_i32_0 : i32, i32
  }
  func.func @transform_2(%arg0: i32) -> (i32, i32) {
    %c0_i32 = arith.constant 0 : i32
    %c0_i32_0 = arith.constant 0 : i32
    %c0_i32_1 = arith.constant 0 : i32
    return %c0_i32, %c0_i32_0 : i32, i32
  }
  func.func @transform_3(%arg0: i32) -> (i32, i32) {
    %c0_i32 = arith.constant 0 : i32
    %c0_i32_0 = arith.constant 0 : i32
    %c0_i32_1 = arith.constant 0 : i32
    return %c0_i32, %c0_i32_0 : i32, i32
  }
  func.func @transform_4(%arg0: i32) -> (i32, i32, i32) {
    %c0_i32 = arith.constant 0 : i32
    %c0_i32_0 = arith.constant 0 : i32
    %c0_i32_1 = arith.constant 0 : i32
    %c0_i32_2 = arith.constant 0 : i32
    return %c0_i32, %c0_i32_0, %c0_i32_1 : i32, i32, i32
  }
  func.func @transform_5(%arg0: i32) -> (i32, i32) {
    %c0_i32 = arith.constant 0 : i32
    %c0_i32_0 = arith.constant 0 : i32
    %c0_i32_1 = arith.constant 0 : i32
    return %c0_i32, %c0_i32_0 : i32, i32
  }
  func.func @transform_6(%arg0: i32) -> (i32, i32) {
    %c0_i32 = arith.constant 0 : i32
    %c0_i32_0 = arith.constant 0 : i32
    %c0_i32_1 = arith.constant 0 : i32
    return %c0_i32, %c0_i32_0 : i32, i32
  }
  func.func @transform_7(%arg0: i32) -> (i32, i32) {
    %c0_i32 = arith.constant 0 : i32
    %c0_i32_0 = arith.constant 0 : i32
    %c0_i32_1 = arith.constant 0 : i32
    return %c0_i32, %c0_i32_0 : i32, i32
  }
  func.func @transform_8(%arg0: i32) -> (i32, i32) {
    %c0_i32 = arith.constant 0 : i32
    %c0_i32_0 = arith.constant 0 : i32
    %c0_i32_1 = arith.constant 0 : i32
    return %c0_i32, %c0_i32_0 : i32, i32
  }
  func.func @transform_9(%arg0: i32) -> (i32, i32) {
    %c0_i32 = arith.constant 0 : i32
    %c0_i32_0 = arith.constant 0 : i32
    %c0_i32_1 = arith.constant 0 : i32
    return %c0_i32, %c0_i32_0 : i32, i32
  }
  func.func @transform_10(%arg0: i32) -> (i32, i32) {
    %c0_i32 = arith.constant 0 : i32
    %c0_i32_0 = arith.constant 0 : i32
    %c0_i32_1 = arith.constant 0 : i32
    return %c0_i32, %c0_i32_0 : i32, i32
  }
  func.func @transform_11(%arg0: i32) -> (i32, i32) {
    %c0_i32 = arith.constant 0 : i32
    %c0_i32_0 = arith.constant 0 : i32
    %c0_i32_1 = arith.constant 0 : i32
    return %c0_i32, %c0_i32_0 : i32, i32
  }
  func.func @transform_12(%arg0: i32) -> (i32, i32) {
    %c0_i32 = arith.constant 0 : i32
    %c0_i32_0 = arith.constant 0 : i32
    %c0_i32_1 = arith.constant 0 : i32
    return %c0_i32, %c0_i32_0 : i32, i32
  }
  func.func @transform_13(%arg0: i32) -> (i32, i32) {
    %c0_i32 = arith.constant 0 : i32
    %c0_i32_0 = arith.constant 0 : i32
    %c0_i32_1 = arith.constant 0 : i32
    return %c0_i32, %c0_i32_0 : i32, i32
  }
  func.func @transform_14(%arg0: i32) -> (i32, i32) {
    %c0_i32 = arith.constant 0 : i32
    %c0_i32_0 = arith.constant 0 : i32
    %c0_i32_1 = arith.constant 0 : i32
    return %c0_i32, %c0_i32_0 : i32, i32
  }
  func.func @transform_15(%arg0: i32) -> (i32, i32) {
    %c0_i32 = arith.constant 0 : i32
    %c0_i32_0 = arith.constant 0 : i32
    %c0_i32_1 = arith.constant 0 : i32
    return %c0_i32, %c0_i32_0 : i32, i32
  }
  func.func @transform_16(%arg0: i32) -> (i32, i32, i32, i32) {
    %c0_i32 = arith.constant 0 : i32
    %c0_i32_0 = arith.constant 0 : i32
    %c0_i32_1 = arith.constant 0 : i32
    %c0_i32_2 = arith.constant 0 : i32
    return %arg0, %c0_i32, %c0_i32_0, %c0_i32_1 : i32, i32, i32, i32
  }
}

</mosaic_0001>

<llo_original>
// kernel: block_apply.1
$region0: #{block_apply.1}
  #allocation0 [shape = 'u32[]', space=smem, size = 0x4, offset = 0x4, fixed_abs, tag = 'smem constant byte address 0x4 - core index']
  #allocation1 [shape = 'u32[144,128]{1,0:T(1,128)}', space=vmem, size = 0x12000, scoped, tag = 'internal scratch']
  #allocation2 [shape = 'f32[18,18,16]{2,1,0:T(8,128)}', space=vmem, size = 0x36000, scoped, tag = 'scratch operand']
  %s0 = inlined_call_operand.vmem [shape: f32[2,16,16,16], index: 0, kind: input, shape index: {}]
  %s1 = inlined_call_operand.vmem [shape: bf16[16,16], index: 1, kind: input, shape index: {}]
  %s2 = inlined_call_operand.vmem [shape: f32[1,16], index: 2, kind: input, shape index: {}]
  %s3 = inlined_call_operand.vmem [shape: f32[1,16], index: 3, kind: input, shape index: {}]
  %s4 = inlined_call_operand.vmem [shape: f32[3,3,16], index: 4, kind: input, shape index: {}]
  %s5 = inlined_call_operand.vmem [shape: f32[1,16], index: 5, kind: input, shape index: {}]
  %s6 = inlined_call_operand.vmem [shape: f32[1,16], index: 6, kind: input, shape index: {}]
  %s7 = inlined_call_operand.vmem [shape: bf16[16,16], index: 7, kind: input, shape index: {}]
  %s8 = inlined_call_operand.vmem [shape: f32[1,16], index: 8, kind: input, shape index: {}]
  %s9 = inlined_call_operand.vmem [shape: f32[1,16], index: 9, kind: input, shape index: {}]
  %s10 = inlined_call_operand.vmem [shape: f32[16,4], index: 10, kind: input, shape index: {}]
  %s11 = inlined_call_operand.vmem [shape: f32[1,4], index: 11, kind: input, shape index: {}]
  %s12 = inlined_call_operand.vmem [shape: f32[1,4], index: 12, kind: input, shape index: {}]
  %s13 = inlined_call_operand.vmem [shape: f32[4,16], index: 13, kind: input, shape index: {}]
  %s14 = inlined_call_operand.vmem [shape: f32[1,16], index: 14, kind: input, shape index: {}]
  %s15 = inlined_call_operand.vmem [shape: f32[1,16], index: 15, kind: input, shape index: {}]
  %s16 = inlined_call_operand.hbm [shape: f32[2,8,8,16], index: 16, kind: output, shape index: {}]
  %s17 = sld [smem:[#allocation0]]
  $region97: #{block_apply.1} parent=0
    _
  %s19 = ssub.s32 1, %s17
  %s20 = scalar_select 0, %s19, %s17
  $region1: #{block_apply.1} parent=0
    #allocation3 [shape = 'u8[65536]{0}', space=vmem, size = 0x10000, scoped, tag = 'output window, operand 0']
    #allocation4 [shape = 's32[2]{0}', space=sflag, size = 0x8, scoped, tag = 'scoped memory for block_apply.1']
    %21 = vsyncpa [#allocation4], 0
    %s22 = scalar_lea.sflag [#allocation4], 1
    %23 = vsyncpa %s22, 0
    loop: start=0, step=1, limit=4
    $region2: #{block_apply.1} parent=1 // loop_pre_header
      _
    $region3: #{block_apply.1} parent=1 // loop_header
      %s25 = sphi 0, %s29
      %p26 = scmp.ge.s32.totalorder %s25, 4
      %s35 = sphi 0, %s37
      %s38 = sphi 0, %s35
      %s39 = sphi 0, %s38
      %s55 = sphi 0, %s39
      %s59 = sphi 0, %s59
      %s61 = sphi 0, %s59
      %s62 = sphi 0, %s61
      %s76 = sphi 0, %s62
      %s80 = sphi 0, %s80
      %s82 = sphi 0, %s80
      %s83 = sphi 0, %s82
      %s97 = sphi 0, %s83
      %s101 = sphi 0, %s101
      %s103 = sphi 0, %s101
      %s104 = sphi 0, %s103
      %s118 = sphi 0, %s104
      %s122 = sphi 0, %s122
      %s124 = sphi 0, %s122
      %s125 = sphi 0, %s124
      %s139 = sphi 0, %s125
      %s143 = sphi 0, %s143
      %s145 = sphi 0, %s143
      %s146 = sphi 0, %s145
      %s160 = sphi 0, %s146
      %s164 = sphi 0, %s164
      %s166 = sphi 0, %s164
      %s167 = sphi 0, %s166
      %s181 = sphi 0, %s167
      %s185 = sphi 0, %s185
      %s187 = sphi 0, %s185
      %s188 = sphi 0, %s187
      %s202 = sphi 0, %s188
      %s206 = sphi 0, %s206
      %s208 = sphi 0, %s206
      %s209 = sphi 0, %s208
      %s223 = sphi 0, %s209
      %s227 = sphi 0, %s227
      %s229 = sphi 0, %s227
      %s230 = sphi 0, %s229
      %s244 = sphi 0, %s230
      %s248 = sphi 0, %s248
      %s250 = sphi 0, %s248
      %s251 = sphi 0, %s250
      %s265 = sphi 0, %s251
      %s269 = sphi 0, %s269
      %s271 = sphi 0, %s269
      %s272 = sphi 0, %s271
      %s286 = sphi 0, %s272
      %s290 = sphi 0, %s290
      %s292 = sphi 0, %s290
      %s293 = sphi 0, %s292
      %s307 = sphi 0, %s293
      %s311 = sphi 0, %s311
      %s313 = sphi 0, %s311
      %s314 = sphi 0, %s313
      %s328 = sphi 0, %s314
      %s332 = sphi 0, %s332
      %s334 = sphi 0, %s332
      %s335 = sphi 0, %s334
      %s349 = sphi 0, %s335
      %s353 = sphi 0, %s353
      %s355 = sphi 0, %s353
      %s356 = sphi 0, %s355
      %s370 = sphi 0, %s356
      %s376 = sphi 0, %s378
      %s379 = sphi 0, %s376
      %s380 = sphi 0, %s379
      %s396 = sphi 0, %s380
    $region4: #{block_apply.1} parent=1 // loop_header_branch
      %28 = sbr.rel (%p26) target = $region8
    $region5: #{block_apply.1} parent=1 // loop_body
      %s30 = ssub.s32 %s25, 1
      %s31 = ssub.s32 %s25, 2
      %s32 = sadd.s32 %s25, 1
      %s33 = ssub.s32 %s25, %s32
      %p34 = scmp.eq.s32.totalorder %s33, 0
      %s36 = sadd.s32 %s35, 1
      %s37 = scalar_select %p34, %s35, %s36
      %p40 = pneg %p34
      %p41 = scmp.eq.s32.totalorder %s25, 1
      %p42 = por %p40, %p41
      %p43 = scmp.ne.s32.totalorder %s35, %s38
      %p44 = scmp.eq.s32.totalorder %s25, 0
      %p45 = por %p43, %p44
      %p46 = scmp.ne.s32.totalorder %s35, %s38
      %p47 = scmp.eq.s32.totalorder %s30, 1
      %p48 = por %p46, %p47
      %p49 = scmp.ne.s32.totalorder %s38, %s39
      %p50 = scmp.eq.s32.totalorder %s30, 0
      %p51 = por %p49, %p50
      %p52 = scmp.ne.s32.totalorder %s38, %s39
      %p53 = scmp.eq.s32.totalorder %s31, 1
      %p54 = por %p52, %p53
      %p56 = scmp.ne.s32.totalorder %s39, %s55
      %p57 = scmp.eq.s32.totalorder %s31, 0
      %p58 = por %p56, %p57
      %s60 = sadd.s32 %s59, 1
      %p63 = scmp.eq.s32.totalorder %s25, 1
      %p64 = scmp.ne.s32.totalorder %s59, %s61
      %p65 = scmp.eq.s32.totalorder %s25, 0
      %p66 = por %p64, %p65
      %p67 = scmp.ne.s32.totalorder %s59, %s61
      %p68 = scmp.eq.s32.totalorder %s30, 1
      %p69 = por %p67, %p68
      %p70 = scmp.ne.s32.totalorder %s61, %s62
      %p71 = scmp.eq.s32.totalorder %s30, 0
      %p72 = por %p70, %p71
      %p73 = scmp.ne.s32.totalorder %s61, %s62
      %p74 = scmp.eq.s32.totalorder %s31, 1
      %p75 = por %p73, %p74
      %p77 = scmp.ne.s32.totalorder %s62, %s76
      %p78 = scmp.eq.s32.totalorder %s31, 0
      %p79 = por %p77, %p78
      %s81 = sadd.s32 %s80, 1
      %p84 = scmp.eq.s32.totalorder %s25, 1
      %p85 = scmp.ne.s32.totalorder %s80, %s82
      %p86 = scmp.eq.s32.totalorder %s25, 0
      %p87 = por %p85, %p86
      %p88 = scmp.ne.s32.totalorder %s80, %s82
      %p89 = scmp.eq.s32.totalorder %s30, 1
      %p90 = por %p88, %p89
      %p91 = scmp.ne.s32.totalorder %s82, %s83
      %p92 = scmp.eq.s32.totalorder %s30, 0
      %p93 = por %p91, %p92
      %p94 = scmp.ne.s32.totalorder %s82, %s83
      %p95 = scmp.eq.s32.totalorder %s31, 1
      %p96 = por %p94, %p95
      %p98 = scmp.ne.s32.totalorder %s83, %s97
      %p99 = scmp.eq.s32.totalorder %s31, 0
      %p100 = por %p98, %p99
      %s102 = sadd.s32 %s101, 1
      %p105 = scmp.eq.s32.totalorder %s25, 1
      %p106 = scmp.ne.s32.totalorder %s101, %s103
      %p107 = scmp.eq.s32.totalorder %s25, 0
      %p108 = por %p106, %p107
      %p109 = scmp.ne.s32.totalorder %s101, %s103
      %p110 = scmp.eq.s32.totalorder %s30, 1
      %p111 = por %p109, %p110
      %p112 = scmp.ne.s32.totalorder %s103, %s104
      %p113 = scmp.eq.s32.totalorder %s30, 0
      %p114 = por %p112, %p113
      %p115 = scmp.ne.s32.totalorder %s103, %s104
      %p116 = scmp.eq.s32.totalorder %s31, 1
      %p117 = por %p115, %p116
      %p119 = scmp.ne.s32.totalorder %s104, %s118
      %p120 = scmp.eq.s32.totalorder %s31, 0
      %p121 = por %p119, %p120
      %s123 = sadd.s32 %s122, 1
      %p126 = scmp.eq.s32.totalorder %s25, 1
      %p127 = scmp.ne.s32.totalorder %s122, %s124
      %p128 = scmp.eq.s32.totalorder %s25, 0
      %p129 = por %p127, %p128
      %p130 = scmp.ne.s32.totalorder %s122, %s124
      %p131 = scmp.eq.s32.totalorder %s30, 1
      %p132 = por %p130, %p131
      %p133 = scmp.ne.s32.totalorder %s124, %s125
      %p134 = scmp.eq.s32.totalorder %s30, 0
      %p135 = por %p133, %p134
      %p136 = scmp.ne.s32.totalorder %s124, %s125
      %p137 = scmp.eq.s32.totalorder %s31, 1
      %p138 = por %p136, %p137
      %p140 = scmp.ne.s32.totalorder %s125, %s139
      %p141 = scmp.eq.s32.totalorder %s31, 0
      %p142 = por %p140, %p141
      %s144 = sadd.s32 %s143, 1
      %p147 = scmp.eq.s32.totalorder %s25, 1
      %p148 = scmp.ne.s32.totalorder %s143, %s145
      %p149 = scmp.eq.s32.totalorder %s25, 0
      %p150 = por %p148, %p149
      %p151 = scmp.ne.s32.totalorder %s143, %s145
      %p152 = scmp.eq.s32.totalorder %s30, 1
      %p153 = por %p151, %p152
      %p154 = scmp.ne.s32.totalorder %s145, %s146
      %p155 = scmp.eq.s32.totalorder %s30, 0
      %p156 = por %p154, %p155
      %p157 = scmp.ne.s32.totalorder %s145, %s146
      %p158 = scmp.eq.s32.totalorder %s31, 1
      %p159 = por %p157, %p158
      %p161 = scmp.ne.s32.totalorder %s146, %s160
      %p162 = scmp.eq.s32.totalorder %s31, 0
      %p163 = por %p161, %p162
      %s165 = sadd.s32 %s164, 1
      %p168 = scmp.eq.s32.totalorder %s25, 1
      %p169 = scmp.ne.s32.totalorder %s164, %s166
      %p170 = scmp.eq.s32.totalorder %s25, 0
      %p171 = por %p169, %p170
      %p172 = scmp.ne.s32.totalorder %s164, %s166
      %p173 = scmp.eq.s32.totalorder %s30, 1
      %p174 = por %p172, %p173
      %p175 = scmp.ne.s32.totalorder %s166, %s167
      %p176 = scmp.eq.s32.totalorder %s30, 0
      %p177 = por %p175, %p176
      %p178 = scmp.ne.s32.totalorder %s166, %s167
      %p179 = scmp.eq.s32.totalorder %s31, 1
      %p180 = por %p178, %p179
      %p182 = scmp.ne.s32.totalorder %s167, %s181
      %p183 = scmp.eq.s32.totalorder %s31, 0
      %p184 = por %p182, %p183
      %s186 = sadd.s32 %s185, 1
      %p189 = scmp.eq.s32.totalorder %s25, 1
      %p190 = scmp.ne.s32.totalorder %s185, %s187
      %p191 = scmp.eq.s32.totalorder %s25, 0
      %p192 = por %p190, %p191
      %p193 = scmp.ne.s32.totalorder %s185, %s187
      %p194 = scmp.eq.s32.totalorder %s30, 1
      %p195 = por %p193, %p194
      %p196 = scmp.ne.s32.totalorder %s187, %s188
      %p197 = scmp.eq.s32.totalorder %s30, 0
      %p198 = por %p196, %p197
      %p199 = scmp.ne.s32.totalorder %s187, %s188
      %p200 = scmp.eq.s32.totalorder %s31, 1
      %p201 = por %p199, %p200
      %p203 = scmp.ne.s32.totalorder %s188, %s202
      %p204 = scmp.eq.s32.totalorder %s31, 0
      %p205 = por %p203, %p204
      %s207 = sadd.s32 %s206, 1
      %p210 = scmp.eq.s32.totalorder %s25, 1
      %p211 = scmp.ne.s32.totalorder %s206, %s208
      %p212 = scmp.eq.s32.totalorder %s25, 0
      %p213 = por %p211, %p212
      %p214 = scmp.ne.s32.totalorder %s206, %s208
      %p215 = scmp.eq.s32.totalorder %s30, 1
      %p216 = por %p214, %p215
      %p217 = scmp.ne.s32.totalorder %s208, %s209
      %p218 = scmp.eq.s32.totalorder %s30, 0
      %p219 = por %p217, %p218
      %p220 = scmp.ne.s32.totalorder %s208, %s209
      %p221 = scmp.eq.s32.totalorder %s31, 1
      %p222 = por %p220, %p221
      %p224 = scmp.ne.s32.totalorder %s209, %s223
      %p225 = scmp.eq.s32.totalorder %s31, 0
      %p226 = por %p224, %p225
      %s228 = sadd.s32 %s227, 1
      %p231 = scmp.eq.s32.totalorder %s25, 1
      %p232 = scmp.ne.s32.totalorder %s227, %s229
      %p233 = scmp.eq.s32.totalorder %s25, 0
      %p234 = por %p232, %p233
      %p235 = scmp.ne.s32.totalorder %s227, %s229
      %p236 = scmp.eq.s32.totalorder %s30, 1
      %p237 = por %p235, %p236
      %p238 = scmp.ne.s32.totalorder %s229, %s230
      %p239 = scmp.eq.s32.totalorder %s30, 0
      %p240 = por %p238, %p239
      %p241 = scmp.ne.s32.totalorder %s229, %s230
      %p242 = scmp.eq.s32.totalorder %s31, 1
      %p243 = por %p241, %p242
      %p245 = scmp.ne.s32.totalorder %s230, %s244
      %p246 = scmp.eq.s32.totalorder %s31, 0
      %p247 = por %p245, %p246
      %s249 = sadd.s32 %s248, 1
      %p252 = scmp.eq.s32.totalorder %s25, 1
      %p253 = scmp.ne.s32.totalorder %s248, %s250
      %p254 = scmp.eq.s32.totalorder %s25, 0
      %p255 = por %p253, %p254
      %p256 = scmp.ne.s32.totalorder %s248, %s250
      %p257 = scmp.eq.s32.totalorder %s30, 1
      %p258 = por %p256, %p257
      %p259 = scmp.ne.s32.totalorder %s250, %s251
      %p260 = scmp.eq.s32.totalorder %s30, 0
      %p261 = por %p259, %p260
      %p262 = scmp.ne.s32.totalorder %s250, %s251
      %p263 = scmp.eq.s32.totalorder %s31, 1
      %p264 = por %p262, %p263
      %p266 = scmp.ne.s32.totalorder %s251, %s265
      %p267 = scmp.eq.s32.totalorder %s31, 0
      %p268 = por %p266, %p267
      %s270 = sadd.s32 %s269, 1
      %p273 = scmp.eq.s32.totalorder %s25, 1
      %p274 = scmp.ne.s32.totalorder %s269, %s271
      %p275 = scmp.eq.s32.totalorder %s25, 0
      %p276 = por %p274, %p275
      %p277 = scmp.ne.s32.totalorder %s269, %s271
      %p278 = scmp.eq.s32.totalorder %s30, 1
      %p279 = por %p277, %p278
      %p280 = scmp.ne.s32.totalorder %s271, %s272
      %p281 = scmp.eq.s32.totalorder %s30, 0
      %p282 = por %p280, %p281
      %p283 = scmp.ne.s32.totalorder %s271, %s272
      %p284 = scmp.eq.s32.totalorder %s31, 1
      %p285 = por %p283, %p284
      %p287 = scmp.ne.s32.totalorder %s272, %s286
      %p288 = scmp.eq.s32.totalorder %s31, 0
      %p289 = por %p287, %p288
      %s291 = sadd.s32 %s290, 1
      %p294 = scmp.eq.s32.totalorder %s25, 1
      %p295 = scmp.ne.s32.totalorder %s290, %s292
      %p296 = scmp.eq.s32.totalorder %s25, 0
      %p297 = por %p295, %p296
      %p298 = scmp.ne.s32.totalorder %s290, %s292
      %p299 = scmp.eq.s32.totalorder %s30, 1
      %p300 = por %p298, %p299
      %p301 = scmp.ne.s32.totalorder %s292, %s293
      %p302 = scmp.eq.s32.totalorder %s30, 0
      %p303 = por %p301, %p302
      %p304 = scmp.ne.s32.totalorder %s292, %s293
      %p305 = scmp.eq.s32.totalorder %s31, 1
      %p306 = por %p304, %p305
      %p308 = scmp.ne.s32.totalorder %s293, %s307
      %p309 = scmp.eq.s32.totalorder %s31, 0
      %p310 = por %p308, %p309
      %s312 = sadd.s32 %s311, 1
      %p315 = scmp.eq.s32.totalorder %s25, 1
      %p316 = scmp.ne.s32.totalorder %s311, %s313
      %p317 = scmp.eq.s32.totalorder %s25, 0
      %p318 = por %p316, %p317
      %p319 = scmp.ne.s32.totalorder %s311, %s313
      %p320 = scmp.eq.s32.totalorder %s30, 1
      %p321 = por %p319, %p320
      %p322 = scmp.ne.s32.totalorder %s313, %s314
      %p323 = scmp.eq.s32.totalorder %s30, 0
      %p324 = por %p322, %p323
      %p325 = scmp.ne.s32.totalorder %s313, %s314
      %p326 = scmp.eq.s32.totalorder %s31, 1
      %p327 = por %p325, %p326
      %p329 = scmp.ne.s32.totalorder %s314, %s328
      %p330 = scmp.eq.s32.totalorder %s31, 0
      %p331 = por %p329, %p330
      %s333 = sadd.s32 %s332, 1
      %p336 = scmp.eq.s32.totalorder %s25, 1
      %p337 = scmp.ne.s32.totalorder %s332, %s334
      %p338 = scmp.eq.s32.totalorder %s25, 0
      %p339 = por %p337, %p338
      %p340 = scmp.ne.s32.totalorder %s332, %s334
      %p341 = scmp.eq.s32.totalorder %s30, 1
      %p342 = por %p340, %p341
      %p343 = scmp.ne.s32.totalorder %s334, %s335
      %p344 = scmp.eq.s32.totalorder %s30, 0
      %p345 = por %p343, %p344
      %p346 = scmp.ne.s32.totalorder %s334, %s335
      %p347 = scmp.eq.s32.totalorder %s31, 1
      %p348 = por %p346, %p347
      %p350 = scmp.ne.s32.totalorder %s335, %s349
      %p351 = scmp.eq.s32.totalorder %s31, 0
      %p352 = por %p350, %p351
      %s354 = sadd.s32 %s353, 1
      %p357 = scmp.eq.s32.totalorder %s25, 1
      %p358 = scmp.ne.s32.totalorder %s353, %s355
      %p359 = scmp.eq.s32.totalorder %s25, 0
      %p360 = por %p358, %p359
      %p361 = scmp.ne.s32.totalorder %s353, %s355
      %p362 = scmp.eq.s32.totalorder %s30, 1
      %p363 = por %p361, %p362
      %p364 = scmp.ne.s32.totalorder %s355, %s356
      %p365 = scmp.eq.s32.totalorder %s30, 0
      %p366 = por %p364, %p365
      %p367 = scmp.ne.s32.totalorder %s355, %s356
      %p368 = scmp.eq.s32.totalorder %s31, 1
      %p369 = por %p367, %p368
      %p371 = scmp.ne.s32.totalorder %s356, %s370
      %p372 = scmp.eq.s32.totalorder %s31, 0
      %p373 = por %p371, %p372
      %s374 = ssub.s32 %s25, %s32
      %p375 = scmp.eq.s32.totalorder %s374, 0
      %s377 = sadd.s32 %s376, 1
      %s378 = scalar_select %p375, %s376, %s377
      %p381 = pneg %p375
      %p382 = scmp.eq.s32.totalorder %s25, 1
      %p383 = por %p381, %p382
      %p384 = scmp.ne.s32.totalorder %s376, %s379
      %p385 = scmp.eq.s32.totalorder %s25, 0
      %p386 = por %p384, %p385
      %p387 = scmp.ne.s32.totalorder %s376, %s379
      %p388 = scmp.eq.s32.totalorder %s30, 1
      %p389 = por %p387, %p388
      %p390 = scmp.ne.s32.totalorder %s379, %s380
      %p391 = scmp.eq.s32.totalorder %s30, 0
      %p392 = por %p390, %p391
      %p393 = scmp.ne.s32.totalorder %s379, %s380
      %p394 = scmp.eq.s32.totalorder %s31, 1
      %p395 = por %p393, %p394
      %p397 = scmp.ne.s32.totalorder %s380, %s396
      %p398 = scmp.eq.s32.totalorder %s31, 0
      %p399 = por %p397, %p398
      %p400 = scmp.le.s32.totalorder 1, %s25
      %p401 = scmp.lt.s32.totalorder %s25, 3
      %p402 = pnand %p400, %p401
      %p403 = pneg %p402
      // Predicated region
      $region9: #{block_apply.1} parent=5 // pred_check
        _
      $region10: #{block_apply.1} parent=5 // pred_check_branch
        %405 = sbr.rel (%p402) target = $region12
      $region11: #{block_apply.1} parent=5 // pred_region
        %s406 = ssub.s32 %s25, 1
        // Predicated region
        $region13: #{block_apply.1} parent=11 // pred_check
          %p407 = pneg %p72
        $region14: #{block_apply.1} parent=11 // pred_check_branch
          %409 = sbr.rel (%p407) target = $region16
        $region15: #{block_apply.1} parent=11 // pred_region
          _
        $region16: #{block_apply.1} parent=11 // pred_fallthru
          _
        // Predicated region
        $region17: #{block_apply.1} parent=11 // pred_check
          %p410 = pneg %p93
        $region18: #{block_apply.1} parent=11 // pred_check_branch
          %412 = sbr.rel (%p410) target = $region20
        $region19: #{block_apply.1} parent=11 // pred_region
          _
        $region20: #{block_apply.1} parent=11 // pred_fallthru
          _
        // Predicated region
        $region21: #{block_apply.1} parent=11 // pred_check
          %p413 = pneg %p114
        $region22: #{block_apply.1} parent=11 // pred_check_branch
          %415 = sbr.rel (%p413) target = $region24
        $region23: #{block_apply.1} parent=11 // pred_region
          _
        $region24: #{block_apply.1} parent=11 // pred_fallthru
          _
        // Predicated region
        $region25: #{block_apply.1} parent=11 // pred_check
          %p416 = pneg %p135
        $region26: #{block_apply.1} parent=11 // pred_check_branch
          %418 = sbr.rel (%p416) target = $region28
        $region27: #{block_apply.1} parent=11 // pred_region
          _
        $region28: #{block_apply.1} parent=11 // pred_fallthru
          _
        // Predicated region
        $region29: #{block_apply.1} parent=11 // pred_check
          %p419 = pneg %p156
        $region30: #{block_apply.1} parent=11 // pred_check_branch
          %421 = sbr.rel (%p419) target = $region32
        $region31: #{block_apply.1} parent=11 // pred_region
          _
        $region32: #{block_apply.1} parent=11 // pred_fallthru
          _
        // Predicated region
        $region33: #{block_apply.1} parent=11 // pred_check
          %p422 = pneg %p177
        $region34: #{block_apply.1} parent=11 // pred_check_branch
          %424 = sbr.rel (%p422) target = $region36
        $region35: #{block_apply.1} parent=11 // pred_region
          _
        $region36: #{block_apply.1} parent=11 // pred_fallthru
          _
        // Predicated region
        $region37: #{block_apply.1} parent=11 // pred_check
          %p425 = pneg %p198
        $region38: #{block_apply.1} parent=11 // pred_check_branch
          %427 = sbr.rel (%p425) target = $region40
        $region39: #{block_apply.1} parent=11 // pred_region
          _
        $region40: #{block_apply.1} parent=11 // pred_fallthru
          _
        // Predicated region
        $region41: #{block_apply.1} parent=11 // pred_check
          %p428 = pneg %p219
        $region42: #{block_apply.1} parent=11 // pred_check_branch
          %430 = sbr.rel (%p428) target = $region44
        $region43: #{block_apply.1} parent=11 // pred_region
          _
        $region44: #{block_apply.1} parent=11 // pred_fallthru
          _
        // Predicated region
        $region45: #{block_apply.1} parent=11 // pred_check
          %p431 = pneg %p240
        $region46: #{block_apply.1} parent=11 // pred_check_branch
          %433 = sbr.rel (%p431) target = $region48
        $region47: #{block_apply.1} parent=11 // pred_region
          _
        $region48: #{block_apply.1} parent=11 // pred_fallthru
          _
        // Predicated region
        $region49: #{block_apply.1} parent=11 // pred_check
          %p434 = pneg %p261
        $region50: #{block_apply.1} parent=11 // pred_check_branch
          %436 = sbr.rel (%p434) target = $region52
        $region51: #{block_apply.1} parent=11 // pred_region
          _
        $region52: #{block_apply.1} parent=11 // pred_fallthru
          _
        // Predicated region
        $region53: #{block_apply.1} parent=11 // pred_check
          %p437 = pneg %p282
        $region54: #{block_apply.1} parent=11 // pred_check_branch
          %439 = sbr.rel (%p437) target = $region56
        $region55: #{block_apply.1} parent=11 // pred_region
          _
        $region56: #{block_apply.1} parent=11 // pred_fallthru
          _
        // Predicated region
        $region57: #{block_apply.1} parent=11 // pred_check
          %p440 = pneg %p303
        $region58: #{block_apply.1} parent=11 // pred_check_branch
          %442 = sbr.rel (%p440) target = $region60
        $region59: #{block_apply.1} parent=11 // pred_region
          _
        $region60: #{block_apply.1} parent=11 // pred_fallthru
          _
        // Predicated region
        $region61: #{block_apply.1} parent=11 // pred_check
          %p443 = pneg %p324
        $region62: #{block_apply.1} parent=11 // pred_check_branch
          %445 = sbr.rel (%p443) target = $region64
        $region63: #{block_apply.1} parent=11 // pred_region
          _
        $region64: #{block_apply.1} parent=11 // pred_fallthru
          _
        // Predicated region
        $region65: #{block_apply.1} parent=11 // pred_check
          %p446 = pneg %p345
        $region66: #{block_apply.1} parent=11 // pred_check_branch
          %448 = sbr.rel (%p446) target = $region68
        $region67: #{block_apply.1} parent=11 // pred_region
          _
        $region68: #{block_apply.1} parent=11 // pred_fallthru
          _
        // Predicated region
        $region69: #{block_apply.1} parent=11 // pred_check
          %p449 = pneg %p366
        $region70: #{block_apply.1} parent=11 // pred_check_branch
          %451 = sbr.rel (%p449) target = $region72
        $region71: #{block_apply.1} parent=11 // pred_region
          _
        $region72: #{block_apply.1} parent=11 // pred_fallthru
          _
      $region12: #{block_apply.1} parent=5 // pred_fallthru
        _
      %p452 = scmp.lt.s32.totalorder %s25, 2
      // Predicated region
      $region73: #{block_apply.1} parent=5 // pred_check
        %p453 = pneg %p452
      $region74: #{block_apply.1} parent=5 // pred_check_branch
        %455 = sbr.rel (%p453) target = $region76
      $region75: #{block_apply.1} parent=5 // pred_region
        // Predicated region
        $region77: #{block_apply.1} parent=75 // pred_check
          %p456 = pneg %p45
        $region78: #{block_apply.1} parent=75 // pred_check_branch
          %458 = sbr.rel (%p456) target = $region80
        $region79: #{block_apply.1} parent=75 // pred_region
          %p459 = scmp.lt.s32.totalorder %s25, 1
          %s460 = scalar_select %p459, %s25, 1
          %s461 = smul.addr %s460, 32
          %s462 = smul.addr %s461, 8
          %s463 = scalar_lea.vmem %s0, %s462
        $region80: #{block_apply.1} parent=75 // pred_fallthru
          _
      $region76: #{block_apply.1} parent=5 // pred_fallthru
        _
      %p464 = scmp.le.s32.totalorder 1, %s25
      %p465 = scmp.lt.s32.totalorder %s25, 3
      %p466 = pnand %p464, %p465
      %p467 = pneg %p466
      // Predicated region
      $region81: #{block_apply.1} parent=5 // pred_check
        _
      $region82: #{block_apply.1} parent=5 // pred_check_branch
        %469 = sbr.rel (%p466) target = $region84
      $region83: #{block_apply.1} parent=5 // pred_region
        %s470 = ssub.s32 %s25, 1
        %p471 = scmp.lt.s32.totalorder %s30, 1
        %s472 = scalar_select %p471, %s30, 1
        %s473 = smul.addr %s472, 32
        %s474 = smul.addr %s473, 8
        %s475 = scalar_lea.vmem %s0, %s474
        %p476 = pneg %p51
        %p477 = pneg %p48
        %p478 = pneg %p72
        %p479 = pneg %p69
        %p480 = pneg %p93
        %p481 = pneg %p90
        %p482 = pneg %p114
        %p483 = pneg %p111
        %p484 = pneg %p135
        %p485 = pneg %p132
        %p486 = pneg %p156
        %p487 = pneg %p153
        %p488 = pneg %p177
        %p489 = pneg %p174
        %p490 = pneg %p198
        %p491 = pneg %p195
        %p492 = pneg %p219
        %p493 = pneg %p216
        %p494 = pneg %p240
        %p495 = pneg %p237
        %p496 = pneg %p261
        %p497 = pneg %p258
        %p498 = pneg %p282
        %p499 = pneg %p279
        %p500 = pneg %p303
        %p501 = pneg %p300
        %p502 = pneg %p324
        %p503 = pneg %p321
        %p504 = pneg %p345
        %p505 = pneg %p342
        %p506 = pneg %p366
        %p507 = pneg %p363
        %p508 = pneg %p392
        %p509 = pneg %p389
        %s510 = sand.u32 %s379, 1
        %s511 = scalar_lea.sflag [#allocation4], %s510
        %s512 = sand.u32 %s379, 1
        %s513 = smul.addr %s512, 64
        %s514 = scalar_lea.vmem [#allocation3], %s513
        %p515 = scmp.lt.s32.totalorder %s30, 1
        %s516 = scalar_select %p515, %s30, 1
        %s517 = smul.addr %s516, 32
        %s518 = smul.addr %s517, 8
        %s519 = scalar_lea.vmem %s0, %s518
        %v521 = vld [vmem:[%s519] sm:$0xff]
        %v522 = vld [vmem:[%s519 + $0x8] sm:$0xff]
        %v523 = vld [vmem:[%s519 + $0x10] sm:$0xff]
        %v524 = vld [vmem:[%s519 + $0x18] sm:$0xff]
        %v525 = vld [vmem:[%s519 + $0x20] sm:$0xff]
        %v526 = vld [vmem:[%s519 + $0x28] sm:$0xff]
        %v527 = vld [vmem:[%s519 + $0x30] sm:$0xff]
        %v528 = vld [vmem:[%s519 + $0x38] sm:$0xff]
        %v529 = vld [vmem:[%s519 + $0x40] sm:$0xff]
        %v530 = vld [vmem:[%s519 + $0x48] sm:$0xff]
        %v531 = vld [vmem:[%s519 + $0x50] sm:$0xff]
        %v532 = vld [vmem:[%s519 + $0x58] sm:$0xff]
        %v533 = vld [vmem:[%s519 + $0x60] sm:$0xff]
        %v534 = vld [vmem:[%s519 + $0x68] sm:$0xff]
        %v535 = vld [vmem:[%s519 + $0x70] sm:$0xff]
        %v536 = vld [vmem:[%s519 + $0x78] sm:$0xff]
        %v537 = vld [vmem:[%s519 + $0x80] sm:$0xff]
        %v538 = vld [vmem:[%s519 + $0x88] sm:$0xff]
        %v539 = vld [vmem:[%s519 + $0x90] sm:$0xff]
        %v540 = vld [vmem:[%s519 + $0x98] sm:$0xff]
        %v541 = vld [vmem:[%s519 + $0xa0] sm:$0xff]
        %v542 = vld [vmem:[%s519 + $0xa8] sm:$0xff]
        %v543 = vld [vmem:[%s519 + $0xb0] sm:$0xff]
        %v544 = vld [vmem:[%s519 + $0xb8] sm:$0xff]
        %v545 = vld [vmem:[%s519 + $0xc0] sm:$0xff]
        %v546 = vld [vmem:[%s519 + $0xc8] sm:$0xff]
        %v547 = vld [vmem:[%s519 + $0xd0] sm:$0xff]
        %v548 = vld [vmem:[%s519 + $0xd8] sm:$0xff]
        %v549 = vld [vmem:[%s519 + $0xe0] sm:$0xff]
        %v550 = vld [vmem:[%s519 + $0xe8] sm:$0xff]
        %v551 = vld [vmem:[%s519 + $0xf0] sm:$0xff]
        %v552 = vld [vmem:[%s519 + $0xf8] sm:$0xff]
        %v553 = vpack.c.bf16 %v522, %v521
        %v554 = vpack.c.bf16 %v524, %v523
        %v555 = vpack.c.bf16 %v526, %v525
        %v556 = vpack.c.bf16 %v528, %v527
        %v557 = vpack.c.bf16 %v530, %v529
        %v558 = vpack.c.bf16 %v532, %v531
        %v559 = vpack.c.bf16 %v534, %v533
        %v560 = vpack.c.bf16 %v536, %v535
        %v561 = vpack.c.bf16 %v538, %v537
        %v562 = vpack.c.bf16 %v540, %v539
        %v563 = vpack.c.bf16 %v542, %v541
        %v564 = vpack.c.bf16 %v544, %v543
        %v565 = vpack.c.bf16 %v546, %v545
        %v566 = vpack.c.bf16 %v548, %v547
        %v567 = vpack.c.bf16 %v550, %v549
        %v568 = vpack.c.bf16 %v552, %v551
        %v569 = vld [vmem:[%s1] sm:$0xf]
        %v570 = vld [vmem:[%s1 + $0x4] sm:$0xf]
        %v573 = vunpack.c.l.b16 %v569
        %v574 = vunpack.c.l.b16 %v570
        %v575 = vpack.c.b16 %v574, %v573
        %vm577 = vcmask 130048
        %v579 = vsel %vm577, %v553, 0
        %v582 = vsel %vm577, %v554, 0
        %v585 = vsel %vm577, %v555, 0
        %v588 = vsel %vm577, %v556, 0
        %v591 = vsel %vm577, %v557, 0
        %v594 = vsel %vm577, %v558, 0
        %v597 = vsel %vm577, %v559, 0
        %v600 = vsel %vm577, %v560, 0
        %v603 = vsel %vm577, %v561, 0
        %v606 = vsel %vm577, %v562, 0
        %v609 = vsel %vm577, %v563, 0
        %v612 = vsel %vm577, %v564, 0
        %v615 = vsel %vm577, %v565, 0
        %v618 = vsel %vm577, %v566, 0
        %v621 = vsel %vm577, %v567, 0
        %v624 = vsel %vm577, %v568, 0
        %626 = vmatprep.subr.bf16.mxu0 0
        %627 = vmatpush1.bf16.msra.mxu0 %v575
        %628 = vmatprep.subr.bf16.mxu0 0
        %629 = vmatpush1.bf16.msra.mxu0 0
        %630 = vmatprep.subr.bf16.mxu0 0
        %631 = vmatpush1.bf16.msra.mxu0 0
        %632 = vmatprep.subr.bf16.mxu0 0
        %633 = vmatpush1.bf16.msra.mxu0 0
        %634 = vmatprep.subr.bf16.mxu0 0
        %635 = vmatpush1.bf16.msra.mxu0 0
        %636 = vmatprep.subr.bf16.mxu0 0
        %637 = vmatpush1.bf16.msra.mxu0 0
        %638 = vmatprep.subr.bf16.mxu0 0
        %639 = vmatpush1.bf16.msra.mxu0 0
        %640 = vmatprep.subr.bf16.mxu0 0
        %641 = vmatpush1.bf16.msra.mxu0 0
        %642 = vmatprep.subr.bf16.mxu0 0
        %643 = vmatpush1.bf16.msra.mxu0 0
        %644 = vmatprep.subr.bf16.mxu0 0
        %645 = vmatpush1.bf16.msra.mxu0 0
        %646 = vmatprep.subr.bf16.mxu0 0
        %647 = vmatpush1.bf16.msra.mxu0 0
        %648 = vmatprep.subr.bf16.mxu0 0
        %649 = vmatpush1.bf16.msra.mxu0 0
        %650 = vmatprep.subr.bf16.mxu0 0
        %651 = vmatpush1.bf16.msra.mxu0 0
        %652 = vmatprep.subr.bf16.mxu0 0
        %653 = vmatpush1.bf16.msra.mxu0 0
        %654 = vmatprep.subr.bf16.mxu0 0
        %655 = vmatpush1.bf16.msra.mxu0 0
        %656 = vmatprep.subr.bf16.mxu0 0
        %657 = vmatpush1.bf16.msra.mxu0 0
        %658 = vmatprep.mubr.bf16.mxu0 0
        %659 = vmatmul.mubr.bf16.gmra.mrb[0].mxu0 %v579
        %v660 = vpop.f32.mrb[0].mxu0
        %v661 = vadd.f32 0.0, %v660
        %v662 = vpop.f32.mrb[0].mxu0
        %v663 = vpop.f32.mrb[0].mxu0
        %v664 = vadd.f32 0.0, %v663
        %v665 = vpop.f32.mrb[0].mxu0
        %666 = vmatprep.mubr.bf16.mxu0 0
        %667 = vmatmul.mubr.bf16.gmra.mrb[0].mxu0 %v582
        %v668 = vpop.f32.mrb[0].mxu0
        %v669 = vadd.f32 0.0, %v668
        %v670 = vpop.f32.mrb[0].mxu0
        %v671 = vpop.f32.mrb[0].mxu0
        %v672 = vadd.f32 0.0, %v671
        %v673 = vpop.f32.mrb[0].mxu0
        %674 = vmatprep.mubr.bf16.mxu0 0
        %675 = vmatmul.mubr.bf16.gmra.mrb[0].mxu0 %v585
        %v676 = vpop.f32.mrb[0].mxu0
        %v677 = vadd.f32 0.0, %v676
        %v678 = vpop.f32.mrb[0].mxu0
        %v679 = vpop.f32.mrb[0].mxu0
        %v680 = vadd.f32 0.0, %v679
        %v681 = vpop.f32.mrb[0].mxu0
        %682 = vmatprep.mubr.bf16.mxu0 0
        %683 = vmatmul.mubr.bf16.gmra.mrb[0].mxu0 %v588
        %v684 = vpop.f32.mrb[0].mxu0
        %v685 = vadd.f32 0.0, %v684
        %v686 = vpop.f32.mrb[0].mxu0
        %v687 = vpop.f32.mrb[0].mxu0
        %v688 = vadd.f32 0.0, %v687
        %v689 = vpop.f32.mrb[0].mxu0
        %690 = vmatprep.mubr.bf16.mxu0 0
        %691 = vmatmul.mubr.bf16.gmra.mrb[0].mxu0 %v591
        %v692 = vpop.f32.mrb[0].mxu0
        %v693 = vadd.f32 0.0, %v692
        %v694 = vpop.f32.mrb[0].mxu0
        %v695 = vpop.f32.mrb[0].mxu0
        %v696 = vadd.f32 0.0, %v695
        %v697 = vpop.f32.mrb[0].mxu0
        %698 = vmatprep.mubr.bf16.mxu0 0
        %699 = vmatmul.mubr.bf16.gmra.mrb[0].mxu0 %v594
        %v700 = vpop.f32.mrb[0].mxu0
        %v701 = vadd.f32 0.0, %v700
        %v702 = vpop.f32.mrb[0].mxu0
        %v703 = vpop.f32.mrb[0].mxu0
        %v704 = vadd.f32 0.0, %v703
        %v705 = vpop.f32.mrb[0].mxu0
        %706 = vmatprep.mubr.bf16.mxu0 0
        %707 = vmatmul.mubr.bf16.gmra.mrb[0].mxu0 %v597
        %v708 = vpop.f32.mrb[0].mxu0
        %v709 = vadd.f32 0.0, %v708
        %v710 = vpop.f32.mrb[0].mxu0
        %v711 = vpop.f32.mrb[0].mxu0
        %v712 = vadd.f32 0.0, %v711
        %v713 = vpop.f32.mrb[0].mxu0
        %714 = vmatprep.mubr.bf16.mxu0 0
        %715 = vmatmul.mubr.bf16.gmra.mrb[0].mxu0 %v600
        %v716 = vpop.f32.mrb[0].mxu0
        %v717 = vadd.f32 0.0, %v716
        %v718 = vpop.f32.mrb[0].mxu0
        %v719 = vpop.f32.mrb[0].mxu0
        %v720 = vadd.f32 0.0, %v719
        %v721 = vpop.f32.mrb[0].mxu0
        %722 = vmatprep.mubr.bf16.mxu0 0
        %723 = vmatmul.mubr.bf16.gmra.mrb[0].mxu0 %v603
        %v724 = vpop.f32.mrb[0].mxu0
        %v725 = vadd.f32 0.0, %v724
        %v726 = vpop.f32.mrb[0].mxu0
        %v727 = vpop.f32.mrb[0].mxu0
        %v728 = vadd.f32 0.0, %v727
        %v729 = vpop.f32.mrb[0].mxu0
        %730 = vmatprep.mubr.bf16.mxu0 0
        %731 = vmatmul.mubr.bf16.gmra.mrb[0].mxu0 %v606
        %v732 = vpop.f32.mrb[0].mxu0
        %v733 = vadd.f32 0.0, %v732
        %v734 = vpop.f32.mrb[0].mxu0
        %v735 = vpop.f32.mrb[0].mxu0
        %v736 = vadd.f32 0.0, %v735
        %v737 = vpop.f32.mrb[0].mxu0
        %738 = vmatprep.mubr.bf16.mxu0 0
        %739 = vmatmul.mubr.bf16.gmra.mrb[0].mxu0 %v609
        %v740 = vpop.f32.mrb[0].mxu0
        %v741 = vadd.f32 0.0, %v740
        %v742 = vpop.f32.mrb[0].mxu0
        %v743 = vpop.f32.mrb[0].mxu0
        %v744 = vadd.f32 0.0, %v743
        %v745 = vpop.f32.mrb[0].mxu0
        %746 = vmatprep.mubr.bf16.mxu0 0
        %747 = vmatmul.mubr.bf16.gmra.mrb[0].mxu0 %v612
        %v748 = vpop.f32.mrb[0].mxu0
        %v749 = vadd.f32 0.0, %v748
        %v750 = vpop.f32.mrb[0].mxu0
        %v751 = vpop.f32.mrb[0].mxu0
        %v752 = vadd.f32 0.0, %v751
        %v753 = vpop.f32.mrb[0].mxu0
        %754 = vmatprep.mubr.bf16.mxu0 0
        %755 = vmatmul.mubr.bf16.gmra.mrb[0].mxu0 %v615
        %v756 = vpop.f32.mrb[0].mxu0
        %v757 = vadd.f32 0.0, %v756
        %v758 = vpop.f32.mrb[0].mxu0
        %v759 = vpop.f32.mrb[0].mxu0
        %v760 = vadd.f32 0.0, %v759
        %v761 = vpop.f32.mrb[0].mxu0
        %762 = vmatprep.mubr.bf16.mxu0 0
        %763 = vmatmul.mubr.bf16.gmra.mrb[0].mxu0 %v618
        %v764 = vpop.f32.mrb[0].mxu0
        %v765 = vadd.f32 0.0, %v764
        %v766 = vpop.f32.mrb[0].mxu0
        %v767 = vpop.f32.mrb[0].mxu0
        %v768 = vadd.f32 0.0, %v767
        %v769 = vpop.f32.mrb[0].mxu0
        %770 = vmatprep.mubr.bf16.mxu0 0
        %771 = vmatmul.mubr.bf16.gmra.mrb[0].mxu0 %v621
        %v772 = vpop.f32.mrb[0].mxu0
        %v773 = vadd.f32 0.0, %v772
        %v774 = vpop.f32.mrb[0].mxu0
        %v775 = vpop.f32.mrb[0].mxu0
        %v776 = vadd.f32 0.0, %v775
        %v777 = vpop.f32.mrb[0].mxu0
        %778 = vmatprep.mubr.bf16.mxu0 0
        %779 = vmatmul.mubr.bf16.gmra.mrb[0].mxu0 %v624
        %v780 = vpop.f32.mrb[0].mxu0
        %v781 = vadd.f32 0.0, %v780
        %v782 = vpop.f32.mrb[0].mxu0
        %v783 = vpop.f32.mrb[0].mxu0
        %v784 = vadd.f32 0.0, %v783
        %v785 = vpop.f32.mrb[0].mxu0
        %786 = vdwg.mxu0
        %v787 = vld [vmem:[%s2] sm:$0x1]
        %v789 = vlaneseq
        %v790 = vshrl.u32 %v789, 7
        %v791 = vsub.s32 0, %v790
        %v792 = vrot.slane %v787, %v791
        %v794 = vmul.f32 %v661, %v792
        %v795 = vmul.f32 %v664, %v792
        %v796 = vmul.f32 %v669, %v792
        %v797 = vmul.f32 %v672, %v792
        %v798 = vmul.f32 %v677, %v792
        %v799 = vmul.f32 %v680, %v792
        %v800 = vmul.f32 %v685, %v792
        %v801 = vmul.f32 %v688, %v792
        %v802 = vmul.f32 %v693, %v792
        %v803 = vmul.f32 %v696, %v792
        %v804 = vmul.f32 %v701, %v792
        %v805 = vmul.f32 %v704, %v792
        %v806 = vmul.f32 %v709, %v792
        %v807 = vmul.f32 %v712, %v792
        %v808 = vmul.f32 %v717, %v792
        %v809 = vmul.f32 %v720, %v792
        %v810 = vmul.f32 %v725, %v792
        %v811 = vmul.f32 %v728, %v792
        %v812 = vmul.f32 %v733, %v792
        %v813 = vmul.f32 %v736, %v792
        %v814 = vmul.f32 %v741, %v792
        %v815 = vmul.f32 %v744, %v792
        %v816 = vmul.f32 %v749, %v792
        %v817 = vmul.f32 %v752, %v792
        %v818 = vmul.f32 %v757, %v792
        %v819 = vmul.f32 %v760, %v792
        %v820 = vmul.f32 %v765, %v792
        %v821 = vmul.f32 %v768, %v792
        %v822 = vmul.f32 %v773, %v792
        %v823 = vmul.f32 %v776, %v792
        %v824 = vmul.f32 %v781, %v792
        %v825 = vmul.f32 %v784, %v792
        %v826 = vld [vmem:[%s3] sm:$0x1]
        %v828 = vlaneseq
        %v829 = vshrl.u32 %v828, 7
        %v830 = vsub.s32 0, %v829
        %v831 = vrot.slane %v826, %v830
        %v833 = vadd.f32 %v794, %v831
        %v834 = vadd.f32 %v795, %v831
        %v835 = vadd.f32 %v796, %v831
        %v836 = vadd.f32 %v797, %v831
        %v837 = vadd.f32 %v798, %v831
        %v838 = vadd.f32 %v799, %v831
        %v839 = vadd.f32 %v800, %v831
        %v840 = vadd.f32 %v801, %v831
        %v841 = vadd.f32 %v802, %v831
        %v842 = vadd.f32 %v803, %v831
        %v843 = vadd.f32 %v804, %v831
        %v844 = vadd.f32 %v805, %v831
        %v845 = vadd.f32 %v806, %v831
        %v846 = vadd.f32 %v807, %v831
        %v847 = vadd.f32 %v808, %v831
        %v848 = vadd.f32 %v809, %v831
        %v849 = vadd.f32 %v810, %v831
        %v850 = vadd.f32 %v811, %v831
        %v851 = vadd.f32 %v812, %v831
        %v852 = vadd.f32 %v813, %v831
        %v853 = vadd.f32 %v814, %v831
        %v854 = vadd.f32 %v815, %v831
        %v855 = vadd.f32 %v816, %v831
        %v856 = vadd.f32 %v817, %v831
        %v857 = vadd.f32 %v818, %v831
        %v858 = vadd.f32 %v819, %v831
        %v859 = vadd.f32 %v820, %v831
        %v860 = vadd.f32 %v821, %v831
        %v861 = vadd.f32 %v822, %v831
        %v862 = vadd.f32 %v823, %v831
        %v863 = vadd.f32 %v824, %v831
        %v864 = vadd.f32 %v825, %v831
        %v865 = vmax.f32 %v833, 0.0
        %v866 = vmax.f32 %v834, 0.0
        %v867 = vmax.f32 %v835, 0.0
        %v868 = vmax.f32 %v836, 0.0
        %v869 = vmax.f32 %v837, 0.0
        %v870 = vmax.f32 %v838, 0.0
        %v871 = vmax.f32 %v839, 0.0
        %v872 = vmax.f32 %v840, 0.0
        %v873 = vmax.f32 %v841, 0.0
        %v874 = vmax.f32 %v842, 0.0
        %v875 = vmax.f32 %v843, 0.0
        %v876 = vmax.f32 %v844, 0.0
        %v877 = vmax.f32 %v845, 0.0
        %v878 = vmax.f32 %v846, 0.0
        %v879 = vmax.f32 %v847, 0.0
        %v880 = vmax.f32 %v848, 0.0
        %v881 = vmax.f32 %v849, 0.0
        %v882 = vmax.f32 %v850, 0.0
        %v883 = vmax.f32 %v851, 0.0
        %v884 = vmax.f32 %v852, 0.0
        %v885 = vmax.f32 %v853, 0.0
        %v886 = vmax.f32 %v854, 0.0
        %v887 = vmax.f32 %v855, 0.0
        %v888 = vmax.f32 %v856, 0.0
        %v889 = vmax.f32 %v857, 0.0
        %v890 = vmax.f32 %v858, 0.0
        %v891 = vmax.f32 %v859, 0.0
        %v892 = vmax.f32 %v860, 0.0
        %v893 = vmax.f32 %v861, 0.0
        %v894 = vmax.f32 %v862, 0.0
        %v895 = vmax.f32 %v863, 0.0
        %v896 = vmax.f32 %v864, 0.0
        %897 = vst.msk [vmem:[#allocation2] sm:$0xff] %vm577, 0.0
        %898 = vst.msk [vmem:[#allocation2 + $0x8] sm:$0xff] %vm577, 0.0
        %vm899 = vcmask 123904
        %900 = vst.msk [vmem:[#allocation2 + $0x10] sm:$0x3] %vm899, 0.0
        %901 = vst.msk [vmem:[#allocation2 + $0x18] sm:$0xff] %vm577, 0.0
        %902 = vst.msk [vmem:[#allocation2 + $0x20] sm:$0xff] %vm577, 0.0
        %903 = vst.msk [vmem:[#allocation2 + $0x28] sm:$0x3] %vm899, 0.0
        %904 = vst.msk [vmem:[#allocation2 + $0x30] sm:$0xff] %vm577, 0.0
        %905 = vst.msk [vmem:[#allocation2 + $0x38] sm:$0xff] %vm577, 0.0
        %906 = vst.msk [vmem:[#allocation2 + $0x40] sm:$0x3] %vm899, 0.0
        %907 = vst.msk [vmem:[#allocation2 + $0x48] sm:$0xff] %vm577, 0.0
        %908 = vst.msk [vmem:[#allocation2 + $0x50] sm:$0xff] %vm577, 0.0
        %909 = vst.msk [vmem:[#allocation2 + $0x58] sm:$0x3] %vm899, 0.0
        %910 = vst.msk [vmem:[#allocation2 + $0x60] sm:$0xff] %vm577, 0.0
        %911 = vst.msk [vmem:[#allocation2 + $0x68] sm:$0xff] %vm577, 0.0
        %912 = vst.msk [vmem:[#allocation2 + $0x70] sm:$0x3] %vm899, 0.0
        %913 = vst.msk [vmem:[#allocation2 + $0x78] sm:$0xff] %vm577, 0.0
        %914 = vst.msk [vmem:[#allocation2 + $0x80] sm:$0xff] %vm577, 0.0
        %915 = vst.msk [vmem:[#allocation2 + $0x88] sm:$0x3] %vm899, 0.0
        %916 = vst.msk [vmem:[#allocation2 + $0x90] sm:$0xff] %vm577, 0.0
        %917 = vst.msk [vmem:[#allocation2 + $0x98] sm:$0xff] %vm577, 0.0
        %918 = vst.msk [vmem:[#allocation2 + $0xa0] sm:$0x3] %vm899, 0.0
        %919 = vst.msk [vmem:[#allocation2 + $0xa8] sm:$0xff] %vm577, 0.0
        %920 = vst.msk [vmem:[#allocation2 + $0xb0] sm:$0xff] %vm577, 0.0
        %921 = vst.msk [vmem:[#allocation2 + $0xb8] sm:$0x3] %vm899, 0.0
        %922 = vst.msk [vmem:[#allocation2 + $0xc0] sm:$0xff] %vm577, 0.0
        %923 = vst.msk [vmem:[#allocation2 + $0xc8] sm:$0xff] %vm577, 0.0
        %924 = vst.msk [vmem:[#allocation2 + $0xd0] sm:$0x3] %vm899, 0.0
        %925 = vst.msk [vmem:[#allocation2 + $0xd8] sm:$0xff] %vm577, 0.0
        %926 = vst.msk [vmem:[#allocation2 + $0xe0] sm:$0xff] %vm577, 0.0
        %927 = vst.msk [vmem:[#allocation2 + $0xe8] sm:$0x3] %vm899, 0.0
        %928 = vst.msk [vmem:[#allocation2 + $0xf0] sm:$0xff] %vm577, 0.0
        %929 = vst.msk [vmem:[#allocation2 + $0xf8] sm:$0xff] %vm577, 0.0
        %930 = vst.msk [vmem:[#allocation2 + $0x100] sm:$0x3] %vm899, 0.0
        %931 = vst.msk [vmem:[#allocation2 + $0x108] sm:$0xff] %vm577, 0.0
        %932 = vst.msk [vmem:[#allocation2 + $0x110] sm:$0xff] %vm577, 0.0
        %933 = vst.msk [vmem:[#allocation2 + $0x118] sm:$0x3] %vm899, 0.0
        %934 = vst.msk [vmem:[#allocation2 + $0x120] sm:$0xff] %vm577, 0.0
        %935 = vst.msk [vmem:[#allocation2 + $0x128] sm:$0xff] %vm577, 0.0
        %936 = vst.msk [vmem:[#allocation2 + $0x130] sm:$0x3] %vm899, 0.0
        %937 = vst.msk [vmem:[#allocation2 + $0x138] sm:$0xff] %vm577, 0.0
        %938 = vst.msk [vmem:[#allocation2 + $0x140] sm:$0xff] %vm577, 0.0
        %939 = vst.msk [vmem:[#allocation2 + $0x148] sm:$0x3] %vm899, 0.0
        %940 = vst.msk [vmem:[#allocation2 + $0x150] sm:$0xff] %vm577, 0.0
        %941 = vst.msk [vmem:[#allocation2 + $0x158] sm:$0xff] %vm577, 0.0
        %942 = vst.msk [vmem:[#allocation2 + $0x160] sm:$0x3] %vm899, 0.0
        %943 = vst.msk [vmem:[#allocation2 + $0x168] sm:$0xff] %vm577, 0.0
        %944 = vst.msk [vmem:[#allocation2 + $0x170] sm:$0xff] %vm577, 0.0
        %945 = vst.msk [vmem:[#allocation2 + $0x178] sm:$0x3] %vm899, 0.0
        %946 = vst.msk [vmem:[#allocation2 + $0x180] sm:$0xff] %vm577, 0.0
        %947 = vst.msk [vmem:[#allocation2 + $0x188] sm:$0xff] %vm577, 0.0
        %948 = vst.msk [vmem:[#allocation2 + $0x190] sm:$0x3] %vm899, 0.0
        %949 = vst.msk [vmem:[#allocation2 + $0x198] sm:$0xff] %vm577, 0.0
        %950 = vst.msk [vmem:[#allocation2 + $0x1a0] sm:$0xff] %vm577, 0.0
        %951 = vst.msk [vmem:[#allocation2 + $0x1a8] sm:$0x3] %vm899, 0.0
        %s952 = scalar_lea.vmem [#allocation2], 24
        %953 = vst.msk [vmem:[%s952 + $0x1] sm:$0xff] %vm577, %v865
        %954 = vst.msk [vmem:[%s952 + $0x9] sm:$0xff] %vm577, %v866
        %955 = vst.msk [vmem:[%s952 + $0x19] sm:$0xff] %vm577, %v867
        %956 = vst.msk [vmem:[%s952 + $0x21] sm:$0xff] %vm577, %v868
        %957 = vst.msk [vmem:[%s952 + $0x31] sm:$0xff] %vm577, %v869
        %958 = vst.msk [vmem:[%s952 + $0x39] sm:$0xff] %vm577, %v870
        %959 = vst.msk [vmem:[%s952 + $0x49] sm:$0xff] %vm577, %v871
        %960 = vst.msk [vmem:[%s952 + $0x51] sm:$0xff] %vm577, %v872
        %961 = vst.msk [vmem:[%s952 + $0x61] sm:$0xff] %vm577, %v873
        %962 = vst.msk [vmem:[%s952 + $0x69] sm:$0xff] %vm577, %v874
        %963 = vst.msk [vmem:[%s952 + $0x79] sm:$0xff] %vm577, %v875
        %964 = vst.msk [vmem:[%s952 + $0x81] sm:$0xff] %vm577, %v876
        %965 = vst.msk [vmem:[%s952 + $0x91] sm:$0xff] %vm577, %v877
        %966 = vst.msk [vmem:[%s952 + $0x99] sm:$0xff] %vm577, %v878
        %967 = vst.msk [vmem:[%s952 + $0xa9] sm:$0xff] %vm577, %v879
        %968 = vst.msk [vmem:[%s952 + $0xb1] sm:$0xff] %vm577, %v880
        %969 = vst.msk [vmem:[%s952 + $0xc1] sm:$0xff] %vm577, %v881
        %970 = vst.msk [vmem:[%s952 + $0xc9] sm:$0xff] %vm577, %v882
        %971 = vst.msk [vmem:[%s952 + $0xd9] sm:$0xff] %vm577, %v883
        %972 = vst.msk [vmem:[%s952 + $0xe1] sm:$0xff] %vm577, %v884
        %973 = vst.msk [vmem:[%s952 + $0xf1] sm:$0xff] %vm577, %v885
        %974 = vst.msk [vmem:[%s952 + $0xf9] sm:$0xff] %vm577, %v886
        %975 = vst.msk [vmem:[%s952 + $0x109] sm:$0xff] %vm577, %v887
        %976 = vst.msk [vmem:[%s952 + $0x111] sm:$0xff] %vm577, %v888
        %977 = vst.msk [vmem:[%s952 + $0x121] sm:$0xff] %vm577, %v889
        %978 = vst.msk [vmem:[%s952 + $0x129] sm:$0xff] %vm577, %v890
        %979 = vst.msk [vmem:[%s952 + $0x139] sm:$0xff] %vm577, %v891
        %980 = vst.msk [vmem:[%s952 + $0x141] sm:$0xff] %vm577, %v892
        %981 = vst.msk [vmem:[%s952 + $0x151] sm:$0xff] %vm577, %v893
        %982 = vst.msk [vmem:[%s952 + $0x159] sm:$0xff] %vm577, %v894
        %983 = vst.msk [vmem:[%s952 + $0x169] sm:$0xff] %vm577, %v895
        %984 = vst.msk [vmem:[%s952 + $0x171] sm:$0xff] %vm577, %v896
        %v985 = vld [vmem:[%s4] sm:$0x7]
        %v986 = vld [vmem:[%s4 + $0x4] sm:$0x7]
        %v987 = vld [vmem:[%s4 + $0x8] sm:$0x7]
        %v988 = vld [vmem:[#allocation2] ss:$2 sm:$0xff]
        %s989 = scalar_lea.vmem [#allocation2], 48
        %v990 = vld [vmem:[%s989] ss:$2 sm:$0xff]
        %s991 = scalar_lea.vmem [#allocation2], 96
        %v992 = vld [vmem:[%s991] ss:$2 sm:$0xff]
        %s993 = scalar_lea.vmem [#allocation2], 144
        %v994 = vld [vmem:[%s993] ss:$2 sm:$0xff]
        %s995 = scalar_lea.vmem [#allocation2], 192
        %v996 = vld [vmem:[%s995] ss:$2 sm:$0xff]
        %s997 = scalar_lea.vmem [#allocation2], 240
        %v998 = vld [vmem:[%s997] ss:$2 sm:$0xff]
        %s999 = scalar_lea.vmem [#allocation2], 288
        %v1000 = vld [vmem:[%s999] ss:$2 sm:$0xff]
        %s1001 = scalar_lea.vmem [#allocation2], 336
        %v1002 = vld [vmem:[%s1001] ss:$2 sm:$0xff]
        %v1003 = vlaneseq
        %v1004 = vshrl.u32 %v1003, 7
        %v1005 = vsub.s32 0, %v1004
        %v1006 = vrot.slane %v985, %v1005
        %v1007 = vmul.f32 %v988, %v1006
        %v1008 = vmul.f32 %v990, %v1006
        %v1009 = vmul.f32 %v992, %v1006
        %v1010 = vmul.f32 %v994, %v1006
        %v1011 = vmul.f32 %v996, %v1006
        %v1012 = vmul.f32 %v998, %v1006
        %v1013 = vmul.f32 %v1000, %v1006
        %v1014 = vmul.f32 %v1002, %v1006
        %v1015 = vadd.f32 %v1007, 0.0
        %v1016 = vadd.f32 %v1008, 0.0
        %v1017 = vadd.f32 %v1009, 0.0
        %v1018 = vadd.f32 %v1010, 0.0
        %v1019 = vadd.f32 %v1011, 0.0
        %v1020 = vadd.f32 %v1012, 0.0
        %v1021 = vadd.f32 %v1013, 0.0
        %v1022 = vadd.f32 %v1014, 0.0
        %s1023 = scalar_lea.vmem [#allocation2], 1
        %v1024 = vld [vmem:[%s1023] ss:$2 sm:$0xff]
        %s1025 = scalar_lea.vmem [#allocation2], 49
        %v1026 = vld [vmem:[%s1025] ss:$2 sm:$0xff]
        %s1027 = scalar_lea.vmem [#allocation2], 97
        %v1028 = vld [vmem:[%s1027] ss:$2 sm:$0xff]
        %s1029 = scalar_lea.vmem [#allocation2], 145
        %v1030 = vld [vmem:[%s1029] ss:$2 sm:$0xff]
        %s1031 = scalar_lea.vmem [#allocation2], 193
        %v1032 = vld [vmem:[%s1031] ss:$2 sm:$0xff]
        %s1033 = scalar_lea.vmem [#allocation2], 241
        %v1034 = vld [vmem:[%s1033] ss:$2 sm:$0xff]
        %s1035 = scalar_lea.vmem [#allocation2], 289
        %v1036 = vld [vmem:[%s1035] ss:$2 sm:$0xff]
        %s1037 = scalar_lea.vmem [#allocation2], 337
        %v1038 = vld [vmem:[%s1037] ss:$2 sm:$0xff]
        %v1039 = vlaneseq
        %v1040 = vshrl.u32 %v1039, 7
        %v1041 = vsub.s32 1, %v1040
        %v1042 = vrot.slane %v985, %v1041
        %v1043 = vmul.f32 %v1024, %v1042
        %v1044 = vmul.f32 %v1026, %v1042
        %v1045 = vmul.f32 %v1028, %v1042
        %v1046 = vmul.f32 %v1030, %v1042
        %v1047 = vmul.f32 %v1032, %v1042
        %v1048 = vmul.f32 %v1034, %v1042
        %v1049 = vmul.f32 %v1036, %v1042
        %v1050 = vmul.f32 %v1038, %v1042
        %v1051 = vadd.f32 %v1015, %v1043
        %v1052 = vadd.f32 %v1016, %v1044
        %v1053 = vadd.f32 %v1017, %v1045
        %v1054 = vadd.f32 %v1018, %v1046
        %v1055 = vadd.f32 %v1019, %v1047
        %v1056 = vadd.f32 %v1020, %v1048
        %v1057 = vadd.f32 %v1021, %v1049
        %v1058 = vadd.f32 %v1022, %v1050
        %s1059 = scalar_lea.vmem [#allocation2], 2
        %v1060 = vld [vmem:[%s1059] ss:$2 sm:$0xff]
        %s1061 = scalar_lea.vmem [#allocation2], 50
        %v1062 = vld [vmem:[%s1061] ss:$2 sm:$0xff]
        %s1063 = scalar_lea.vmem [#allocation2], 98
        %v1064 = vld [vmem:[%s1063] ss:$2 sm:$0xff]
        %s1065 = scalar_lea.vmem [#allocation2], 146
        %v1066 = vld [vmem:[%s1065] ss:$2 sm:$0xff]
        %s1067 = scalar_lea.vmem [#allocation2], 194
        %v1068 = vld [vmem:[%s1067] ss:$2 sm:$0xff]
        %s1069 = scalar_lea.vmem [#allocation2], 242
        %v1070 = vld [vmem:[%s1069] ss:$2 sm:$0xff]
        %s1071 = scalar_lea.vmem [#allocation2], 290
        %v1072 = vld [vmem:[%s1071] ss:$2 sm:$0xff]
        %s1073 = scalar_lea.vmem [#allocation2], 338
        %v1074 = vld [vmem:[%s1073] ss:$2 sm:$0xff]
        %v1075 = vlaneseq
        %v1076 = vshrl.u32 %v1075, 7
        %v1077 = vsub.s32 2, %v1076
        %v1078 = vrot.slane %v985, %v1077
        %v1079 = vmul.f32 %v1060, %v1078
        %v1080 = vmul.f32 %v1062, %v1078
        %v1081 = vmul.f32 %v1064, %v1078
        %v1082 = vmul.f32 %v1066, %v1078
        %v1083 = vmul.f32 %v1068, %v1078
        %v1084 = vmul.f32 %v1070, %v1078
        %v1085 = vmul.f32 %v1072, %v1078
        %v1086 = vmul.f32 %v1074, %v1078
        %v1087 = vadd.f32 %v1051, %v1079
        %v1088 = vadd.f32 %v1052, %v1080
        %v1089 = vadd.f32 %v1053, %v1081
        %v1090 = vadd.f32 %v1054, %v1082
        %v1091 = vadd.f32 %v1055, %v1083
        %v1092 = vadd.f32 %v1056, %v1084
        %v1093 = vadd.f32 %v1057, %v1085
        %v1094 = vadd.f32 %v1058, %v1086
        %v1095 = vld [vmem:[%s952] ss:$2 sm:$0xff]
        %s1096 = scalar_lea.vmem %s952, 48 [#allocation2]
        %v1097 = vld [vmem:[%s1096] ss:$2 sm:$0xff]
        %s1098 = scalar_lea.vmem %s952, 96 [#allocation2]
        %v1099 = vld [vmem:[%s1098] ss:$2 sm:$0xff]
        %s1100 = scalar_lea.vmem %s952, 144 [#allocation2]
        %v1101 = vld [vmem:[%s1100] ss:$2 sm:$0xff]
        %s1102 = scalar_lea.vmem %s952, 192 [#allocation2]
        %v1103 = vld [vmem:[%s1102] ss:$2 sm:$0xff]
        %s1104 = scalar_lea.vmem %s952, 240 [#allocation2]
        %v1105 = vld [vmem:[%s1104] ss:$2 sm:$0xff]
        %s1106 = scalar_lea.vmem %s952, 288 [#allocation2]
        %v1107 = vld [vmem:[%s1106] ss:$2 sm:$0xff]
        %s1108 = scalar_lea.vmem %s952, 336 [#allocation2]
        %v1109 = vld [vmem:[%s1108] ss:$2 sm:$0xff]
        %v1110 = vlaneseq
        %v1111 = vshrl.u32 %v1110, 7
        %v1112 = vsub.s32 0, %v1111
        %v1113 = vrot.slane %v986, %v1112
        %v1114 = vmul.f32 %v1095, %v1113
        %v1115 = vmul.f32 %v1097, %v1113
        %v1116 = vmul.f32 %v1099, %v1113
        %v1117 = vmul.f32 %v1101, %v1113
        %v1118 = vmul.f32 %v1103, %v1113
        %v1119 = vmul.f32 %v1105, %v1113
        %v1120 = vmul.f32 %v1107, %v1113
        %v1121 = vmul.f32 %v1109, %v1113
        %v1122 = vadd.f32 %v1087, %v1114
        %v1123 = vadd.f32 %v1088, %v1115
        %v1124 = vadd.f32 %v1089, %v1116
        %v1125 = vadd.f32 %v1090, %v1117
        %v1126 = vadd.f32 %v1091, %v1118
        %v1127 = vadd.f32 %v1092, %v1119
        %v1128 = vadd.f32 %v1093, %v1120
        %v1129 = vadd.f32 %v1094, %v1121
        %s1130 = scalar_lea.vmem %s952, 1 [#allocation2]
        %v1131 = vld [vmem:[%s1130] ss:$2 sm:$0xff]
        %s1132 = scalar_lea.vmem %s952, 49 [#allocation2]
        %v1133 = vld [vmem:[%s1132] ss:$2 sm:$0xff]
        %s1134 = scalar_lea.vmem %s952, 97 [#allocation2]
        %v1135 = vld [vmem:[%s1134] ss:$2 sm:$0xff]
        %s1136 = scalar_lea.vmem %s952, 145 [#allocation2]
        %v1137 = vld [vmem:[%s1136] ss:$2 sm:$0xff]
        %s1138 = scalar_lea.vmem %s952, 193 [#allocation2]
        %v1139 = vld [vmem:[%s1138] ss:$2 sm:$0xff]
        %s1140 = scalar_lea.vmem %s952, 241 [#allocation2]
        %v1141 = vld [vmem:[%s1140] ss:$2 sm:$0xff]
        %s1142 = scalar_lea.vmem %s952, 289 [#allocation2]
        %v1143 = vld [vmem:[%s1142] ss:$2 sm:$0xff]
        %s1144 = scalar_lea.vmem %s952, 337 [#allocation2]
        %v1145 = vld [vmem:[%s1144] ss:$2 sm:$0xff]
        %v1146 = vlaneseq
        %v1147 = vshrl.u32 %v1146, 7
        %v1148 = vsub.s32 1, %v1147
        %v1149 = vrot.slane %v986, %v1148
        %v1150 = vmul.f32 %v1131, %v1149
        %v1151 = vmul.f32 %v1133, %v1149
        %v1152 = vmul.f32 %v1135, %v1149
        %v1153 = vmul.f32 %v1137, %v1149
        %v1154 = vmul.f32 %v1139, %v1149
        %v1155 = vmul.f32 %v1141, %v1149
        %v1156 = vmul.f32 %v1143, %v1149
        %v1157 = vmul.f32 %v1145, %v1149
        %v1158 = vadd.f32 %v1122, %v1150
        %v1159 = vadd.f32 %v1123, %v1151
        %v1160 = vadd.f32 %v1124, %v1152
        %v1161 = vadd.f32 %v1125, %v1153
        %v1162 = vadd.f32 %v1126, %v1154
        %v1163 = vadd.f32 %v1127, %v1155
        %v1164 = vadd.f32 %v1128, %v1156
        %v1165 = vadd.f32 %v1129, %v1157
        %s1166 = scalar_lea.vmem %s952, 2 [#allocation2]
        %v1167 = vld [vmem:[%s1166] ss:$2 sm:$0xff]
        %s1168 = scalar_lea.vmem %s952, 50 [#allocation2]
        %v1169 = vld [vmem:[%s1168] ss:$2 sm:$0xff]
        %s1170 = scalar_lea.vmem %s952, 98 [#allocation2]
        %v1171 = vld [vmem:[%s1170] ss:$2 sm:$0xff]
        %s1172 = scalar_lea.vmem %s952, 146 [#allocation2]
        %v1173 = vld [vmem:[%s1172] ss:$2 sm:$0xff]
        %s1174 = scalar_lea.vmem %s952, 194 [#allocation2]
        %v1175 = vld [vmem:[%s1174] ss:$2 sm:$0xff]
        %s1176 = scalar_lea.vmem %s952, 242 [#allocation2]
        %v1177 = vld [vmem:[%s1176] ss:$2 sm:$0xff]
        %s1178 = scalar_lea.vmem %s952, 290 [#allocation2]
        %v1179 = vld [vmem:[%s1178] ss:$2 sm:$0xff]
        %s1180 = scalar_lea.vmem %s952, 338 [#allocation2]
        %v1181 = vld [vmem:[%s1180] ss:$2 sm:$0xff]
        %v1182 = vlaneseq
        %v1183 = vshrl.u32 %v1182, 7
        %v1184 = vsub.s32 2, %v1183
        %v1185 = vrot.slane %v986, %v1184
        %v1186 = vmul.f32 %v1167, %v1185
        %v1187 = vmul.f32 %v1169, %v1185
        %v1188 = vmul.f32 %v1171, %v1185
        %v1189 = vmul.f32 %v1173, %v1185
        %v1190 = vmul.f32 %v1175, %v1185
        %v1191 = vmul.f32 %v1177, %v1185
        %v1192 = vmul.f32 %v1179, %v1185
        %v1193 = vmul.f32 %v1181, %v1185
        %v1194 = vadd.f32 %v1158, %v1186
        %v1195 = vadd.f32 %v1159, %v1187
        %v1196 = vadd.f32 %v1160, %v1188
        %v1197 = vadd.f32 %v1161, %v1189
        %v1198 = vadd.f32 %v1162, %v1190
        %v1199 = vadd.f32 %v1163, %v1191
        %v1200 = vadd.f32 %v1164, %v1192
        %v1201 = vadd.f32 %v1165, %v1193
        %s1202 = scalar_lea.vmem [#allocation2], 48
        %v1203 = vld [vmem:[%s1202] ss:$2 sm:$0xff]
        %s1204 = scalar_lea.vmem %s1202, 48 [#allocation2]
        %v1205 = vld [vmem:[%s1204] ss:$2 sm:$0xff]
        %s1206 = scalar_lea.vmem %s1202, 96 [#allocation2]
        %v1207 = vld [vmem:[%s1206] ss:$2 sm:$0xff]
        %s1208 = scalar_lea.vmem %s1202, 144 [#allocation2]
        %v1209 = vld [vmem:[%s1208] ss:$2 sm:$0xff]
        %s1210 = scalar_lea.vmem %s1202, 192 [#allocation2]
        %v1211 = vld [vmem:[%s1210] ss:$2 sm:$0xff]
        %s1212 = scalar_lea.vmem %s1202, 240 [#allocation2]
        %v1213 = vld [vmem:[%s1212] ss:$2 sm:$0xff]
        %s1214 = scalar_lea.vmem %s1202, 288 [#allocation2]
        %v1215 = vld [vmem:[%s1214] ss:$2 sm:$0xff]
        %s1216 = scalar_lea.vmem %s1202, 336 [#allocation2]
        %v1217 = vld [vmem:[%s1216] ss:$2 sm:$0xff]
        %v1218 = vlaneseq
        %v1219 = vshrl.u32 %v1218, 7
        %v1220 = vsub.s32 0, %v1219
        %v1221 = vrot.slane %v987, %v1220
        %v1222 = vmul.f32 %v1203, %v1221
        %v1223 = vmul.f32 %v1205, %v1221
        %v1224 = vmul.f32 %v1207, %v1221
        %v1225 = vmul.f32 %v1209, %v1221
        %v1226 = vmul.f32 %v1211, %v1221
        %v1227 = vmul.f32 %v1213, %v1221
        %v1228 = vmul.f32 %v1215, %v1221
        %v1229 = vmul.f32 %v1217, %v1221
        %v1230 = vadd.f32 %v1194, %v1222
        %v1231 = vadd.f32 %v1195, %v1223
        %v1232 = vadd.f32 %v1196, %v1224
        %v1233 = vadd.f32 %v1197, %v1225
        %v1234 = vadd.f32 %v1198, %v1226
        %v1235 = vadd.f32 %v1199, %v1227
        %v1236 = vadd.f32 %v1200, %v1228
        %v1237 = vadd.f32 %v1201, %v1229
        %s1238 = scalar_lea.vmem %s1202, 1 [#allocation2]
        %v1239 = vld [vmem:[%s1238] ss:$2 sm:$0xff]
        %s1240 = scalar_lea.vmem %s1202, 49 [#allocation2]
        %v1241 = vld [vmem:[%s1240] ss:$2 sm:$0xff]
        %s1242 = scalar_lea.vmem %s1202, 97 [#allocation2]
        %v1243 = vld [vmem:[%s1242] ss:$2 sm:$0xff]
        %s1244 = scalar_lea.vmem %s1202, 145 [#allocation2]
        %v1245 = vld [vmem:[%s1244] ss:$2 sm:$0xff]
        %s1246 = scalar_lea.vmem %s1202, 193 [#allocation2]
        %v1247 = vld [vmem:[%s1246] ss:$2 sm:$0xff]
        %s1248 = scalar_lea.vmem %s1202, 241 [#allocation2]
        %v1249 = vld [vmem:[%s1248] ss:$2 sm:$0xff]
        %s1250 = scalar_lea.vmem %s1202, 289 [#allocation2]
        %v1251 = vld [vmem:[%s1250] ss:$2 sm:$0xff]
        %s1252 = scalar_lea.vmem %s1202, 337 [#allocation2]
        %v1253 = vld [vmem:[%s1252] ss:$2 sm:$0xff]
        %v1254 = vlaneseq
        %v1255 = vshrl.u32 %v1254, 7
        %v1256 = vsub.s32 1, %v1255
        %v1257 = vrot.slane %v987, %v1256
        %v1258 = vmul.f32 %v1239, %v1257
        %v1259 = vmul.f32 %v1241, %v1257
        %v1260 = vmul.f32 %v1243, %v1257
        %v1261 = vmul.f32 %v1245, %v1257
        %v1262 = vmul.f32 %v1247, %v1257
        %v1263 = vmul.f32 %v1249, %v1257
        %v1264 = vmul.f32 %v1251, %v1257
        %v1265 = vmul.f32 %v1253, %v1257
        %v1266 = vadd.f32 %v1230, %v1258
        %v1267 = vadd.f32 %v1231, %v1259
        %v1268 = vadd.f32 %v1232, %v1260
        %v1269 = vadd.f32 %v1233, %v1261
        %v1270 = vadd.f32 %v1234, %v1262
        %v1271 = vadd.f32 %v1235, %v1263
        %v1272 = vadd.f32 %v1236, %v1264
        %v1273 = vadd.f32 %v1237, %v1265
        %s1274 = scalar_lea.vmem %s1202, 2 [#allocation2]
        %v1275 = vld [vmem:[%s1274] ss:$2 sm:$0xff]
        %s1276 = scalar_lea.vmem %s1202, 50 [#allocation2]
        %v1277 = vld [vmem:[%s1276] ss:$2 sm:$0xff]
        %s1278 = scalar_lea.vmem %s1202, 98 [#allocation2]
        %v1279 = vld [vmem:[%s1278] ss:$2 sm:$0xff]
        %s1280 = scalar_lea.vmem %s1202, 146 [#allocation2]
        %v1281 = vld [vmem:[%s1280] ss:$2 sm:$0xff]
        %s1282 = scalar_lea.vmem %s1202, 194 [#allocation2]
        %v1283 = vld [vmem:[%s1282] ss:$2 sm:$0xff]
        %s1284 = scalar_lea.vmem %s1202, 242 [#allocation2]
        %v1285 = vld [vmem:[%s1284] ss:$2 sm:$0xff]
        %s1286 = scalar_lea.vmem %s1202, 290 [#allocation2]
        %v1287 = vld [vmem:[%s1286] ss:$2 sm:$0xff]
        %s1288 = scalar_lea.vmem %s1202, 338 [#allocation2]
        %v1289 = vld [vmem:[%s1288] ss:$2 sm:$0xff]
        %v1290 = vlaneseq
        %v1291 = vshrl.u32 %v1290, 7
        %v1292 = vsub.s32 2, %v1291
        %v1293 = vrot.slane %v987, %v1292
        %v1294 = vmul.f32 %v1275, %v1293
        %v1295 = vmul.f32 %v1277, %v1293
        %v1296 = vmul.f32 %v1279, %v1293
        %v1297 = vmul.f32 %v1281, %v1293
        %v1298 = vmul.f32 %v1283, %v1293
        %v1299 = vmul.f32 %v1285, %v1293
        %v1300 = vmul.f32 %v1287, %v1293
        %v1301 = vmul.f32 %v1289, %v1293
        %v1302 = vadd.f32 %v1266, %v1294
        %v1303 = vadd.f32 %v1267, %v1295
        %v1304 = vadd.f32 %v1268, %v1296
        %v1305 = vadd.f32 %v1269, %v1297
        %v1306 = vadd.f32 %v1270, %v1298
        %v1307 = vadd.f32 %v1271, %v1299
        %v1308 = vadd.f32 %v1272, %v1300
        %v1309 = vadd.f32 %v1273, %v1301
        %v1310 = vld [vmem:[%s5] sm:$0x1]
        %v1312 = vlaneseq
        %v1313 = vshrl.u32 %v1312, 7
        %v1314 = vsub.s32 0, %v1313
        %v1315 = vrot.slane %v1310, %v1314
        %v1317 = vmul.f32 %v1302, %v1315
        %v1318 = vmul.f32 %v1303, %v1315
        %v1319 = vmul.f32 %v1304, %v1315
        %v1320 = vmul.f32 %v1305, %v1315
        %v1321 = vmul.f32 %v1306, %v1315
        %v1322 = vmul.f32 %v1307, %v1315
        %v1323 = vmul.f32 %v1308, %v1315
        %v1324 = vmul.f32 %v1309, %v1315
        %v1325 = vld [vmem:[%s6] sm:$0x1]
        %v1327 = vlaneseq
        %v1328 = vshrl.u32 %v1327, 7
        %v1329 = vsub.s32 0, %v1328
        %v1330 = vrot.slane %v1325, %v1329
        %v1332 = vadd.f32 %v1317, %v1330
        %v1333 = vadd.f32 %v1318, %v1330
        %v1334 = vadd.f32 %v1319, %v1330
        %v1335 = vadd.f32 %v1320, %v1330
        %v1336 = vadd.f32 %v1321, %v1330
        %v1337 = vadd.f32 %v1322, %v1330
        %v1338 = vadd.f32 %v1323, %v1330
        %v1339 = vadd.f32 %v1324, %v1330
        %v1340 = vmax.f32 %v1332, 0.0
        %v1341 = vmax.f32 %v1333, 0.0
        %v1342 = vmax.f32 %v1334, 0.0
        %v1343 = vmax.f32 %v1335, 0.0
        %v1344 = vmax.f32 %v1336, 0.0
        %v1345 = vmax.f32 %v1337, 0.0
        %v1346 = vmax.f32 %v1338, 0.0
        %v1347 = vmax.f32 %v1339, 0.0
        %v1348 = vpack.c.bf16 %v1341, %v1340
        %v1349 = vpack.c.bf16 %v1343, %v1342
        %v1350 = vpack.c.bf16 %v1345, %v1344
        %v1351 = vpack.c.bf16 %v1347, %v1346
        %v1352 = vld [vmem:[%s7] sm:$0xf]
        %v1353 = vld [vmem:[%s7 + $0x4] sm:$0xf]
        %v1356 = vunpack.c.l.b16 %v1352
        %v1357 = vunpack.c.l.b16 %v1353
        %v1358 = vpack.c.b16 %v1357, %v1356
        %v1361 = vsel %vm577, %v1348, 0
        %v1364 = vsel %vm577, %v1349, 0
        %v1367 = vsel %vm577, %v1350, 0
        %v1370 = vsel %vm577, %v1351, 0
        %1372 = vmatprep.subr.bf16.mxu0 0
        %1373 = vmatpush1.bf16.msra.mxu0 %v1358
        %1374 = vmatprep.subr.bf16.mxu0 0
        %1375 = vmatpush1.bf16.msra.mxu0 0
        %1376 = vmatprep.subr.bf16.mxu0 0
        %1377 = vmatpush1.bf16.msra.mxu0 0
        %1378 = vmatprep.subr.bf16.mxu0 0
        %1379 = vmatpush1.bf16.msra.mxu0 0
        %1380 = vmatprep.subr.bf16.mxu0 0
        %1381 = vmatpush1.bf16.msra.mxu0 0
        %1382 = vmatprep.subr.bf16.mxu0 0
        %1383 = vmatpush1.bf16.msra.mxu0 0
        %1384 = vmatprep.subr.bf16.mxu0 0
        %1385 = vmatpush1.bf16.msra.mxu0 0
        %1386 = vmatprep.subr.bf16.mxu0 0
        %1387 = vmatpush1.bf16.msra.mxu0 0
        %1388 = vmatprep.subr.bf16.mxu0 0
        %1389 = vmatpush1.bf16.msra.mxu0 0
        %1390 = vmatprep.subr.bf16.mxu0 0
        %1391 = vmatpush1.bf16.msra.mxu0 0
        %1392 = vmatprep.subr.bf16.mxu0 0
        %1393 = vmatpush1.bf16.msra.mxu0 0
        %1394 = vmatprep.subr.bf16.mxu0 0
        %1395 = vmatpush1.bf16.msra.mxu0 0
        %1396 = vmatprep.subr.bf16.mxu0 0
        %1397 = vmatpush1.bf16.msra.mxu0 0
        %1398 = vmatprep.subr.bf16.mxu0 0
        %1399 = vmatpush1.bf16.msra.mxu0 0
        %1400 = vmatprep.subr.bf16.mxu0 0
        %1401 = vmatpush1.bf16.msra.mxu0 0
        %1402 = vmatprep.subr.bf16.mxu0 0
        %1403 = vmatpush1.bf16.msra.mxu0 0
        %1404 = vmatprep.mubr.bf16.mxu0 0
        %1405 = vmatmul.mubr.bf16.gmra.mrb[0].mxu0 %v1361
        %v1406 = vpop.f32.mrb[0].mxu0
        %v1407 = vadd.f32 0.0, %v1406
        %v1408 = vpop.f32.mrb[0].mxu0
        %v1409 = vpop.f32.mrb[0].mxu0
        %v1410 = vadd.f32 0.0, %v1409
        %v1411 = vpop.f32.mrb[0].mxu0
        %1412 = vmatprep.mubr.bf16.mxu0 0
        %1413 = vmatmul.mubr.bf16.gmra.mrb[0].mxu0 %v1364
        %v1414 = vpop.f32.mrb[0].mxu0
        %v1415 = vadd.f32 0.0, %v1414
        %v1416 = vpop.f32.mrb[0].mxu0
        %v1417 = vpop.f32.mrb[0].mxu0
        %v1418 = vadd.f32 0.0, %v1417
        %v1419 = vpop.f32.mrb[0].mxu0
        %1420 = vmatprep.mubr.bf16.mxu0 0
        %1421 = vmatmul.mubr.bf16.gmra.mrb[0].mxu0 %v1367
        %v1422 = vpop.f32.mrb[0].mxu0
        %v1423 = vadd.f32 0.0, %v1422
        %v1424 = vpop.f32.mrb[0].mxu0
        %v1425 = vpop.f32.mrb[0].mxu0
        %v1426 = vadd.f32 0.0, %v1425
        %v1427 = vpop.f32.mrb[0].mxu0
        %1428 = vmatprep.mubr.bf16.mxu0 0
        %1429 = vmatmul.mubr.bf16.gmra.mrb[0].mxu0 %v1370
        %v1430 = vpop.f32.mrb[0].mxu0
        %v1431 = vadd.f32 0.0, %v1430
        %v1432 = vpop.f32.mrb[0].mxu0
        %v1433 = vpop.f32.mrb[0].mxu0
        %v1434 = vadd.f32 0.0, %v1433
        %v1435 = vpop.f32.mrb[0].mxu0
        %1436 = vdwg.mxu0
        %v1437 = vld [vmem:[%s8] sm:$0x1]
        %v1439 = vlaneseq
        %v1440 = vshrl.u32 %v1439, 7
        %v1441 = vsub.s32 0, %v1440
        %v1442 = vrot.slane %v1437, %v1441
        %v1444 = vmul.f32 %v1407, %v1442
        %v1445 = vmul.f32 %v1410, %v1442
        %v1446 = vmul.f32 %v1415, %v1442
        %v1447 = vmul.f32 %v1418, %v1442
        %v1448 = vmul.f32 %v1423, %v1442
        %v1449 = vmul.f32 %v1426, %v1442
        %v1450 = vmul.f32 %v1431, %v1442
        %v1451 = vmul.f32 %v1434, %v1442
        %v1452 = vld [vmem:[%s9] sm:$0x1]
        %v1454 = vlaneseq
        %v1455 = vshrl.u32 %v1454, 7
        %v1456 = vsub.s32 0, %v1455
        %v1457 = vrot.slane %v1452, %v1456
        %v1459 = vadd.f32 %v1444, %v1457
        %v1460 = vadd.f32 %v1445, %v1457
        %v1461 = vadd.f32 %v1446, %v1457
        %v1462 = vadd.f32 %v1447, %v1457
        %v1463 = vadd.f32 %v1448, %v1457
        %v1464 = vadd.f32 %v1449, %v1457
        %v1465 = vadd.f32 %v1450, %v1457
        %v1466 = vadd.f32 %v1451, %v1457
        %v1467 = vsel %vm577, %v1459, 0.0
        %v1468 = vsel %vm577, %v1460, 0.0
        %v1469 = vadd.f32 %v1467, %v1468
        %v1470 = vsel %vm577, %v1461, 0.0
        %v1471 = vadd.f32 %v1469, %v1470
        %v1472 = vsel %vm577, %v1462, 0.0
        %v1473 = vadd.f32 %v1471, %v1472
        %v1474 = vsel %vm577, %v1463, 0.0
        %v1475 = vadd.f32 %v1473, %v1474
        %v1476 = vsel %vm577, %v1464, 0.0
        %v1477 = vadd.f32 %v1475, %v1476
        %v1478 = vsel %vm577, %v1465, 0.0
        %v1479 = vadd.f32 %v1477, %v1478
        %v1480 = vsel %vm577, %v1466, 0.0
        %v1481 = vadd.f32 %v1479, %v1480
        %v1482 = vrot.slane %v1481, 4
        %v1483 = vadd.f32 %v1481, %v1482
        %v1484 = vrot.slane %v1483, 2
        %v1485 = vadd.f32 %v1483, %v1484
        %v1486 = vrot.slane %v1485, 1
        %v1487 = vadd.f32 %v1485, %v1486
        %v1488 = vmul.f32 %v1487, 0.015625
        %v1489 = vld [vmem:[%s10] sm:$0xff]
        %v1490 = vld [vmem:[%s10 + $0x8] sm:$0xff]
        %v1492 = vsel %vm577, %v1488, 0
        %1494 = vmatprep.subr.mxu0 0.0
        %1495 = vmatpush1.msra.mxu0 %v1489
        %1496 = vmatprep.subr.mxu0 0.0
        %1497 = vmatpush1.msra.mxu0 %v1490
        %1498 = vmatprep.subr.mxu0 0.0
        %1499 = vmatpush1.msra.mxu0 0.0
        %1500 = vmatprep.subr.mxu0 0.0
        %1501 = vmatpush1.msra.mxu0 0.0
        %1502 = vmatprep.subr.mxu0 0.0
        %1503 = vmatpush1.msra.mxu0 0.0
        %1504 = vmatprep.subr.mxu0 0.0
        %1505 = vmatpush1.msra.mxu0 0.0
        %1506 = vmatprep.subr.mxu0 0.0
        %1507 = vmatpush1.msra.mxu0 0.0
        %1508 = vmatprep.subr.mxu0 0.0
        %1509 = vmatpush1.msra.mxu0 0.0
        %1510 = vmatprep.subr.mxu0 0.0
        %1511 = vmatpush1.msra.mxu0 0.0
        %1512 = vmatprep.subr.mxu0 0.0
        %1513 = vmatpush1.msra.mxu0 0.0
        %1514 = vmatprep.subr.mxu0 0.0
        %1515 = vmatpush1.msra.mxu0 0.0
        %1516 = vmatprep.subr.mxu0 0.0
        %1517 = vmatpush1.msra.mxu0 0.0
        %1518 = vmatprep.subr.mxu0 0.0
        %1519 = vmatpush1.msra.mxu0 0.0
        %1520 = vmatprep.subr.mxu0 0.0
        %1521 = vmatpush1.msra.mxu0 0.0
        %1522 = vmatprep.subr.mxu0 0.0
        %1523 = vmatpush1.msra.mxu0 0.0
        %1524 = vmatprep.subr.mxu0 0.0
        %1525 = vmatpush1.msra.mxu0 0.0
        %1526 = vmatprep.subr.mxu0 0.0
        %1527 = vmatpush1.msra.mxu0 0.0
        %1528 = vmatprep.subr.mxu0 0.0
        %1529 = vmatpush1.msra.mxu0 0.0
        %1530 = vmatprep.subr.mxu0 0.0
        %1531 = vmatpush1.msra.mxu0 0.0
        %1532 = vmatprep.subr.mxu0 0.0
        %1533 = vmatpush1.msra.mxu0 0.0
        %1534 = vmatprep.subr.mxu0 0.0
        %1535 = vmatpush1.msra.mxu0 0.0
        %1536 = vmatprep.subr.mxu0 0.0
        %1537 = vmatpush1.msra.mxu0 0.0
        %1538 = vmatprep.subr.mxu0 0.0
        %1539 = vmatpush1.msra.mxu0 0.0
        %1540 = vmatprep.subr.mxu0 0.0
        %1541 = vmatpush1.msra.mxu0 0.0
        %1542 = vmatprep.subr.mxu0 0.0
        %1543 = vmatpush1.msra.mxu0 0.0
        %1544 = vmatprep.subr.mxu0 0.0
        %1545 = vmatpush1.msra.mxu0 0.0
        %1546 = vmatprep.subr.mxu0 0.0
        %1547 = vmatpush1.msra.mxu0 0.0
        %1548 = vmatprep.subr.mxu0 0.0
        %1549 = vmatpush1.msra.mxu0 0.0
        %1550 = vmatprep.subr.mxu0 0.0
        %1551 = vmatpush1.msra.mxu0 0.0
        %1552 = vmatprep.subr.mxu0 0.0
        %1553 = vmatpush1.msra.mxu0 0.0
        %1554 = vmatprep.subr.mxu0 0.0
        %1555 = vmatpush1.msra.mxu0 0.0
        %1556 = vmatprep.subr.mxu0 0.0
        %1557 = vmatpush1.msra.mxu0 0.0
        %1558 = vmatprep.mubr.f32.mxu0 0.0
        %1559 = vmatmul.mubr.f32.gmra.mrb[0].mxu0 %v1492
        %v1560 = vpop.f32.mrb[0].mxu0
        %v1561 = vadd.f32 0.0, %v1560
        %v1562 = vpop.f32.mrb[0].mxu0
        %1563 = vdwg.mxu0
        %v1564 = vld [vmem:[%s11] sm:$0x1]
        %v1565 = vmul.f32 %v1561, %v1564
        %v1566 = vld [vmem:[%s12] sm:$0x1]
        %v1567 = vadd.f32 %v1565, %v1566
        %v1568 = vmax.f32 %v1567, 0.0
        %v1569 = vld [vmem:[%s13] sm:$0xf]
        %vm1570 = vcmask 31744
        %v1572 = vsel %vm1570, %v1568, 0
        %vm1574 = vcmask 1043456
        %v1576 = vsel %vm1574, %v1569, 0
        %1578 = vmatprep.subr.mxu0 0.0
        %1579 = vmatpush1.msra.mxu0 %v1576
        %1580 = vmatprep.subr.mxu0 0.0
        %1581 = vmatpush1.msra.mxu0 0.0
        %1582 = vmatprep.subr.mxu0 0.0
        %1583 = vmatpush1.msra.mxu0 0.0
        %1584 = vmatprep.subr.mxu0 0.0
        %1585 = vmatpush1.msra.mxu0 0.0
        %1586 = vmatprep.subr.mxu0 0.0
        %1587 = vmatpush1.msra.mxu0 0.0
        %1588 = vmatprep.subr.mxu0 0.0
        %1589 = vmatpush1.msra.mxu0 0.0
        %1590 = vmatprep.subr.mxu0 0.0
        %1591 = vmatpush1.msra.mxu0 0.0
        %1592 = vmatprep.subr.mxu0 0.0
        %1593 = vmatpush1.msra.mxu0 0.0
        %1594 = vmatprep.subr.mxu0 0.0
        %1595 = vmatpush1.msra.mxu0 0.0
        %1596 = vmatprep.subr.mxu0 0.0
        %1597 = vmatpush1.msra.mxu0 0.0
        %1598 = vmatprep.subr.mxu0 0.0
        %1599 = vmatpush1.msra.mxu0 0.0
        %1600 = vmatprep.subr.mxu0 0.0
        %1601 = vmatpush1.msra.mxu0 0.0
        %1602 = vmatprep.subr.mxu0 0.0
        %1603 = vmatpush1.msra.mxu0 0.0
        %1604 = vmatprep.subr.mxu0 0.0
        %1605 = vmatpush1.msra.mxu0 0.0
        %1606 = vmatprep.subr.mxu0 0.0
        %1607 = vmatpush1.msra.mxu0 0.0
        %1608 = vmatprep.subr.mxu0 0.0
        %1609 = vmatpush1.msra.mxu0 0.0
        %1610 = vmatprep.subr.mxu0 0.0
        %1611 = vmatpush1.msra.mxu0 0.0
        %1612 = vmatprep.subr.mxu0 0.0
        %1613 = vmatpush1.msra.mxu0 0.0
        %1614 = vmatprep.subr.mxu0 0.0
        %1615 = vmatpush1.msra.mxu0 0.0
        %1616 = vmatprep.subr.mxu0 0.0
        %1617 = vmatpush1.msra.mxu0 0.0
        %1618 = vmatprep.subr.mxu0 0.0
        %1619 = vmatpush1.msra.mxu0 0.0
        %1620 = vmatprep.subr.mxu0 0.0
        %1621 = vmatpush1.msra.mxu0 0.0
        %1622 = vmatprep.subr.mxu0 0.0
        %1623 = vmatpush1.msra.mxu0 0.0
        %1624 = vmatprep.subr.mxu0 0.0
        %1625 = vmatpush1.msra.mxu0 0.0
        %1626 = vmatprep.subr.mxu0 0.0
        %1627 = vmatpush1.msra.mxu0 0.0
        %1628 = vmatprep.subr.mxu0 0.0
        %1629 = vmatpush1.msra.mxu0 0.0
        %1630 = vmatprep.subr.mxu0 0.0
        %1631 = vmatpush1.msra.mxu0 0.0
        %1632 = vmatprep.subr.mxu0 0.0
        %1633 = vmatpush1.msra.mxu0 0.0
        %1634 = vmatprep.subr.mxu0 0.0
        %1635 = vmatpush1.msra.mxu0 0.0
        %1636 = vmatprep.subr.mxu0 0.0
        %1637 = vmatpush1.msra.mxu0 0.0
        %1638 = vmatprep.subr.mxu0 0.0
        %1639 = vmatpush1.msra.mxu0 0.0
        %1640 = vmatprep.subr.mxu0 0.0
        %1641 = vmatpush1.msra.mxu0 0.0
        %1642 = vmatprep.mubr.f32.mxu0 0.0
        %1643 = vmatmul.mubr.f32.gmra.mrb[0].mxu0 %v1572
        %v1644 = vpop.f32.mrb[0].mxu0
        %v1645 = vadd.f32 0.0, %v1644
        %v1646 = vpop.f32.mrb[0].mxu0
        %1647 = vdwg.mxu0
        %v1648 = vld [vmem:[%s14] sm:$0x1]
        %v1649 = vmul.f32 %v1645, %v1648
        %v1650 = vld [vmem:[%s15] sm:$0x1]
        %v1651 = vadd.f32 %v1649, %v1650
        %v1652 = vadd.f32 %v1651, 3.0
        %v1653 = vmax.f32 %v1652, 0.0
        %v1654 = vmin.f32 %v1653, 6.0
        %v1655 = vmul.f32 %v1654, 0.16666667
        %v1656 = vlaneseq
        %v1657 = vshrl.u32 %v1656, 7
        %v1658 = vsub.s32 0, %v1657
        %v1659 = vrot.slane %v1655, %v1658
        %v1660 = vmul.f32 %v1459, %v1659
        %v1661 = vmul.f32 %v1460, %v1659
        %v1662 = vmul.f32 %v1461, %v1659
        %v1663 = vmul.f32 %v1462, %v1659
        %v1664 = vmul.f32 %v1463, %v1659
        %v1665 = vmul.f32 %v1464, %v1659
        %v1666 = vmul.f32 %v1465, %v1659
        %v1667 = vmul.f32 %v1466, %v1659
        %1668 = vst.msk [vmem:[%s514] sm:$0xff] %vm577, %v1660
        %1669 = vst.msk [vmem:[%s514 + $0x8] sm:$0xff] %vm577, %v1661
        %1670 = vst.msk [vmem:[%s514 + $0x10] sm:$0xff] %vm577, %v1662
        %1671 = vst.msk [vmem:[%s514 + $0x18] sm:$0xff] %vm577, %v1663
        %1672 = vst.msk [vmem:[%s514 + $0x20] sm:$0xff] %vm577, %v1664
        %1673 = vst.msk [vmem:[%s514 + $0x28] sm:$0xff] %vm577, %v1665
        %1674 = vst.msk [vmem:[%s514 + $0x30] sm:$0xff] %vm577, %v1666
        %1675 = vst.msk [vmem:[%s514 + $0x38] sm:$0xff] %vm577, %v1667
        %s1676 = sand.u32 %s379, 1
        %s1677 = scalar_lea.sflag [#allocation4], %s1676
        %s1678 = sand.u32 %s379, 1
        %s1679 = smul.addr %s1678, 64
        %s1680 = scalar_lea.vmem [#allocation3], %s1679
        // Predicated region
        $region85: #{block_apply.1} parent=83 // pred_check
          %p1681 = pneg %p389
        $region86: #{block_apply.1} parent=83 // pred_check_branch
          %1683 = sbr.rel (%p1681) target = $region88
        $region87: #{block_apply.1} parent=83 // pred_region
          %s1685 = ssub.s32 1024, 1024
          %1686 = vsyncadd %s1677, %s1685
          %s1687 = smul.addr %s30, 8
          %s1688 = smul.addr %s1687, 128
          %s1689 = scalar_lea.hbm %s16, %s1688
          %s1690 = sshll.u32 %s1680, 4
          %s1691 = int_to_ptr.vmem [resolvable:$true] %s1690
          %1696 = dma.vmem_to_hbm [thread:$0]  %s1691, 1024, %s1689, %s1677, 128, 128, 8
        $region88: #{block_apply.1} parent=83 // pred_fallthru
          _
      $region84: #{block_apply.1} parent=5 // pred_fallthru
        _
      %p1697 = scmp.le.s32.totalorder 2, %s25
      // Predicated region
      $region89: #{block_apply.1} parent=5 // pred_check
        %p1698 = pneg %p1697
      $region90: #{block_apply.1} parent=5 // pred_check_branch
        %1700 = sbr.rel (%p1698) target = $region92
      $region91: #{block_apply.1} parent=5 // pred_region
        %s1701 = ssub.s32 %s25, 2
        // Predicated region
        $region93: #{block_apply.1} parent=91 // pred_check
          %p1702 = pneg %p395
        $region94: #{block_apply.1} parent=91 // pred_check_branch
          %1704 = sbr.rel (%p1702) target = $region96
        $region95: #{block_apply.1} parent=91 // pred_region
          %s1705 = sand.u32 %s380, 1
          %s1706 = scalar_lea.sflag [#allocation4], %s1705
          %s1707 = sand.u32 %s380, 1
          %s1708 = smul.addr %s1707, 64
          %s1709 = scalar_lea.vmem [#allocation3], %s1708
          %1710 = dma.done %s1706, 1024
        $region96: #{block_apply.1} parent=91 // pred_fallthru
          _
      $region92: #{block_apply.1} parent=5 // pred_fallthru
        _
    $region6: #{block_apply.1} parent=1 // loop_footer
      %s29 = sadd.s32 1, %s25
    $region7: #{block_apply.1} parent=1 // loop_footer_branch
      %24 = sbr.rel target = $region3
    $region8: #{block_apply.1} parent=1 // loop_exit
      _
    %1711 = vsyncpa [#allocation4], 1
    %s1712 = scalar_lea.sflag [#allocation4], 1
    %1713 = vsyncpa %s1712, 1

</llo_original>
